<compile_context>
chip_gen: v7x
topology: tpu7x:2x2x1
jax: 0.10.0
libtpu: 0.0.40
codegen_flags: <defaults>
</compile_context>

<pallas_src>
import functools

import jax
import jax.numpy as jnp
from jax.experimental import pallas as pl
from jax.experimental.pallas import tpu as pltpu

LEAKY_SLOPE = 0.01   # nn.LeakyReLU default negative_slope
BN_EPS = 1e-5        # nn.BatchNorm2d default eps
KSIZE = 3


# ---------------------------------------------------------------------------
# In-kernel helpers
# ---------------------------------------------------------------------------
def _pad_into(xp_ref, tile):
    """Store `tile` (H,W,C) into the interior of the zero-bordered scratch (H+2,W+2,C)."""
    H, W, _ = tile.shape
    xp_ref[1:1 + H, 1:1 + W, :] = tile.astype(xp_ref.dtype)


def _conv3x3(xp_ref, patch_ref, w_ref, b_ref):
    """'same' 3x3 conv of the padded scratch via a single (HW, 9C) x (9C, C) MXU dot."""
    Hp, Wp, C = xp_ref.shape
    H, W = Hp - 2, Wp - 2
    for kh in range(KSIZE):                      # unrolled: 9 VMEM-only patch writes
        for kw in range(KSIZE):
            k = kh * KSIZE + kw
            patch_ref[:, k * C:(k + 1) * C] = (
                xp_ref[kh:kh + H, kw:kw + W, :]
                .reshape(H * W, C)
                .astype(patch_ref.dtype))
    acc = jnp.dot(patch_ref[...], w_ref[...],
                  preferred_element_type=jnp.float32)    # single 9C-deep contraction
    return acc + b_ref[...]                              # (H*W, C) float32


def _accumulate_stats(acc_ref, z):
    acc_ref[0:1, :] += jnp.sum(z, axis=0, keepdims=True)
    acc_ref[1:2, :] += jnp.sum(z * z, axis=0, keepdims=True)


def _finalize_stats(acc_ref, stats_ref, m_total):
    inv_m = 1.0 / m_total
    mean = acc_ref[0:1, :] * inv_m
    var = acc_ref[1:2, :] * inv_m - mean * mean          # biased variance (train-mode BN)
    stats_ref[0:1, :] = mean
    stats_ref[1:2, :] = jax.lax.rsqrt(var + BN_EPS)      # hoisted: one rsqrt per channel


# ---------------------------------------------------------------------------
# Kernels
# ---------------------------------------------------------------------------
def _conv_stats_kernel(x_ref, w_ref, b_ref,               # inputs
                       z_ref, stats_ref,                  # outputs
                       xp_ref, patch_ref, acc_ref,        # scratch
                       *, m_total):
    n = pl.program_id(0)
    H, W, C = x_ref.shape

    @pl.when(n == 0)
    def _init():
        xp_ref[...] = jnp.zeros_like(xp_ref)   # zero border once; interior rewritten/step
        acc_ref[...] = jnp.zeros_like(acc_ref)

    _pad_into(xp_ref, x_ref[...])
    z = _conv3x3(xp_ref, patch_ref, w_ref, b_ref)          # conv1 + bias, f32
    z_ref[...] = z.reshape(H, W, C)
    _accumulate_stats(acc_ref, z)

    @pl.when(n == pl.num_programs(0) - 1)
    def _finalize():
        _finalize_stats(acc_ref, stats_ref, m_total)


def _bn_act_conv_stats_kernel(z1_ref, s1_ref, g1_ref, bt1_ref, w2_ref, b2_ref,  # inputs
                              z2_ref, stats_ref,                                # outputs
                              xp_ref, patch_ref, acc_ref,                       # scratch
                              *, m_total):
    n = pl.program_id(0)
    H, W, C = z1_ref.shape

    @pl.when(n == 0)
    def _init():
        xp_ref[...] = jnp.zeros_like(xp_ref)
        acc_ref[...] = jnp.zeros_like(acc_ref)

    # BN1 (global batch stats, affine) + LeakyReLU, fused in front of conv2.
    scale = s1_ref[1:2, :] * g1_ref[...]                   # (1, C)  inv_std * gamma
    shift = bt1_ref[...] - s1_ref[0:1, :] * scale          # (1, C)  beta - mean*scale
    y = z1_ref[...].reshape(H * W, C) * scale + shift
    y = jnp.where(y >= 0, y, LEAKY_SLOPE * y)

    _pad_into(xp_ref, y.reshape(H, W, C))
    z2 = _conv3x3(xp_ref, patch_ref, w2_ref, b2_ref)       # conv2 + bias, f32
    z2_ref[...] = z2.reshape(H, W, C)
    _accumulate_stats(acc_ref, z2)

    @pl.when(n == pl.num_programs(0) - 1)
    def _finalize():
        _finalize_stats(acc_ref, stats_ref, m_total)


def _bn_res_act_kernel(z2_ref, res_ref, s2_ref, g2_ref, bt2_ref, out_ref):
    H, W, C = z2_ref.shape
    scale = s2_ref[1:2, :] * g2_ref[...]                   # (1, C)
    shift = bt2_ref[...] - s2_ref[0:1, :] * scale          # (1, C)
    y = z2_ref[...].reshape(H * W, C) * scale + shift + res_ref[...].reshape(H * W, C)
    y = jnp.where(y >= 0, y, LEAKY_SLOPE * y)
    out_ref[...] = y.reshape(H, W, C)


# ---------------------------------------------------------------------------
# Wrapper
# ---------------------------------------------------------------------------
def residual_block(x_nchw, params, *, compute_dtype=jnp.bfloat16):
    x = jnp.transpose(x_nchw, (0, 2, 3, 1)).astype(jnp.float32)   # NCHW -> NHWC
    N, H, W, C = x.shape
    m_total = float(N * H * W)
    kk = KSIZE * KSIZE

    w1 = params["w1"].astype(compute_dtype)   # (9C, C) for the MXU
    w2 = params["w2"].astype(compute_dtype)

    # One image per grid step; weights/params/stats stay VMEM-resident.
    act_spec = pl.BlockSpec((None, H, W, C), lambda n: (n, 0, 0, 0))

    def rep(shape):
        return pl.BlockSpec(shape, lambda n: (0,) * len(shape))

    def make_scratch():
        return [
            pltpu.VMEM((H + 2, W + 2, C), jnp.float32),       # zero-padded activation tile
            pltpu.VMEM((H * W, kk * C), compute_dtype),       # im2col patches (VMEM only)
            pltpu.VMEM((2, C), jnp.float32),                  # BN sum / sum-of-squares
        ]

    act_out = jax.ShapeDtypeStruct((N, H, W, C), jnp.float32)
    stats_out = jax.ShapeDtypeStruct((2, C), jnp.float32)

    seq_params = pltpu.CompilerParams(dimension_semantics=("arbitrary",))   # BN accum axis
    par_params = pltpu.CompilerParams(dimension_semantics=("parallel",))

    # Stage 1: conv1 + bias, accumulate global BN1 statistics.
    z1, s1 = pl.pallas_call(
        functools.partial(_conv_stats_kernel, m_total=m_total),
        grid=(N,),
        in_specs=[act_spec, rep((kk * C, C)), rep((1, C))],
        out_specs=[act_spec, rep((2, C))],
        out_shape=[act_out, stats_out],
        scratch_shapes=make_scratch(),
        compiler_params=seq_params,
    )(x, w1, params["b1"])

    # Stage 2: BN1 + LeakyReLU fused into conv2 + bias, accumulate global BN2 statistics.
    z2, s2 = pl.pallas_call(
        functools.partial(_bn_act_conv_stats_kernel, m_total=m_total),
        grid=(N,),
        in_specs=[act_spec, rep((2, C)), rep((1, C)), rep((1, C)),
                  rep((kk * C, C)), rep((1, C))],
        out_specs=[act_spec, rep((2, C))],
        out_shape=[act_out, stats_out],
        scratch_shapes=make_scratch(),
        compiler_params=seq_params,
    )(z1, s1, params["g1"], params["beta1"], w2, params["b2"])

    # Stage 3: BN2 + residual add + LeakyReLU (fully parallel over the batch).
    out = pl.pallas_call(
        _bn_res_act_kernel,
        grid=(N,),
        in_specs=[act_spec, act_spec, rep((2, C)), rep((1, C)), rep((1, C))],
        out_specs=act_spec,
        out_shape=act_out,
        compiler_params=par_params,
    )(z2, x, s2, params["g2"], params["beta2"])

    return jnp.transpose(out, (0, 3, 1, 2))                # back to NCHW


# ---------------------------------------------------------------------------
# Deterministic parameter init (shapes from the PyTorch module's __init__)
# ---------------------------------------------------------------------------
def init_params(key, channels, ksize=KSIZE):
    k1, k2, k3, k4 = jax.random.split(key, 4)
    fan_in = channels * ksize * ksize
    bound = 1.0 / (fan_in ** 0.5)

    def conv_weight(k):
        # PyTorch (Cout, Cin, KH, KW) -> (KH, KW, Cin, Cout) -> (KH*KW*Cin, Cout)
        w_t = jax.random.uniform(k, (channels, channels, ksize, ksize),
                                 jnp.float32, -bound, bound)
        return jnp.transpose(w_t, (2, 3, 1, 0)).reshape(ksize * ksize * channels, channels)

    return {
        "w1": conv_weight(k1),
        "b1": jax.random.uniform(k2, (1, channels), jnp.float32, -bound, bound),
        "g1": jnp.ones((1, channels), jnp.float32),      # BatchNorm2d weight init
        "beta1": jnp.zeros((1, channels), jnp.float32),  # BatchNorm2d bias init
        "w2": conv_weight(k3),
        "b2": jax.random.uniform(k4, (1, channels), jnp.float32, -bound, bound),
        "g2": jnp.ones((1, channels), jnp.float32),
        "beta2": jnp.zeros((1, channels), jnp.float32),
    }


# ---------------------------------------------------------------------------
# Pure-JAX reference (for correctness check)
# ---------------------------------------------------------------------------
def _reference(x_nchw, params, ksize=KSIZE):
    x = jnp.transpose(x_nchw, (0, 2, 3, 1)).astype(jnp.float32)
    C = x.shape[-1]

    def conv(a, w, b):
        w_hwio = w.reshape(ksize, ksize, C, C)
        y = jax.lax.conv_general_dilated(
            a, w_hwio, window_strides=(1, 1), padding="SAME",
            dimension_numbers=("NHWC", "HWIO", "NHWC"))
        return y + b.reshape(1, 1, 1, C)

    def bn(a, g, beta):
        mean = jnp.mean(a, axis=(0, 1, 2), keepdims=True)
        var = jnp.mean(jnp.square(a - mean), axis=(0, 1, 2), keepdims=True)
        return (a - mean) * jax.lax.rsqrt(var + BN_EPS) * g.reshape(1, 1, 1, C) \
            + beta.reshape(1, 1, 1, C)

    def lrelu(a):
        return jnp.where(a >= 0, a, LEAKY_SLOPE * a)

    y = lrelu(bn(conv(x, params["w1"], params["b1"]), params["g1"], params["beta1"]))
    y = bn(conv(y, params["w2"], params["b2"]), params["g2"], params["beta2"])
    y = lrelu(y + x)
    return jnp.transpose(y, (0, 3, 1, 2))


if __name__ == "__main__":
    N, C, H, W = 2, 32, 16, 16          # small: batch=2, channels=32, spatial=16
    key = jax.random.PRNGKey(0)
    kx, kp = jax.random.split(key)
    x = jax.random.normal(kx, (N, C, H, W), jnp.float32)   # NCHW like PyTorch
    params = init_params(kp, C)

    ref = jax.block_until_ready(_reference(x, params))

    # Strict check: f32 MXU path must match the f32 reference tightly.
    out_f32 = jax.block_until_ready(residual_block(x, params, compute_dtype=jnp.float32))
    assert out_f32.shape == (N, C, H, W)
    assert jnp.allclose(out_f32, ref, atol=2e-3, rtol=2e-3)

    # Fast path (default): bf16 MXU inputs, f32 accumulation / epilogue. Loose sanity check.
    out_bf16 = jax.block_until_ready(residual_block(x, params, compute_dtype=jnp.bfloat16))
    assert out_bf16.shape == (N, C, H, W)
    assert jnp.allclose(out_bf16, ref, atol=1.5e-1, rtol=5e-2)

    print("KERNEL_OK")
</pallas_src>

<mosaic_0001>
module attributes {stable_mosaic.version = 11 : i64} {
  func.func @_conv_stats_kernel(%arg0: i32, %arg1: memref<1x16x16x32xf32, #tpu.memory_space<vmem>>, %arg2: memref<288x32xf32, #tpu.memory_space<vmem>>, %arg3: memref<1x32xf32, #tpu.memory_space<vmem>>, %arg4: memref<1x16x16x32xf32, #tpu.memory_space<vmem>>, %arg5: memref<2x32xf32, #tpu.memory_space<vmem>>, %arg6: memref<18x18x32xf32, #tpu.memory_space<vmem>>, %arg7: memref<256x288xf32, #tpu.memory_space<vmem>>, %arg8: memref<2x32xf32, #tpu.memory_space<vmem>>) attributes {dimension_semantics = [#tpu.dimension_semantics<arbitrary>], iteration_bounds = array<i64: 2>, scalar_prefetch = 0 : i64, scratch_operands = 3 : i64, tpu.core_type = #tpu.core_type<tc>, window_params = [{transform_indices = @transform_0, window_bounds = array<i64: 1, 16, 16, 32>}, {pipeline_mode = #tpu.pipeline_mode<synchronous>, transform_indices = @transform_1, window_bounds = array<i64: 288, 32>}, {pipeline_mode = #tpu.pipeline_mode<synchronous>, transform_indices = @transform_2, window_bounds = array<i64: 1, 32>}, {transform_indices = @transform_3, window_bounds = array<i64: 1, 16, 16, 32>}, {pipeline_mode = #tpu.pipeline_mode<synchronous>, transform_indices = @transform_4, window_bounds = array<i64: 2, 32>}]} {
    %c0_i32 = arith.constant 0 : i32
    %0 = arith.cmpi eq, %arg0, %c0_i32 : i32
    %1 = arith.extui %0 : i1 to i32
    %c0_i32_0 = arith.constant 0 : i32
    %2 = arith.cmpi ne, %1, %c0_i32_0 : i32
    scf.if %2 {
      %cst_63 = arith.constant 0.000000e+00 : f32
      %57 = vector.broadcast %cst_63 : f32 to vector<18x18x32xf32>
      %c0_64 = arith.constant 0 : index
      %c0_65 = arith.constant 0 : index
      %c0_66 = arith.constant 0 : index
      %58 = vector.load %arg6[%c0_64, %c0_65, %c0_66] : memref<18x18x32xf32, #tpu.memory_space<vmem>>, vector<18x18x32xf32>
      tpu.vector_store %arg6[%c0_64, %c0_65, %c0_66], %57 {strides = array<i32>} : memref<18x18x32xf32, #tpu.memory_space<vmem>>, vector<18x18x32xf32>,
      %cst_67 = arith.constant 0.000000e+00 : f32
      %59 = vector.broadcast %cst_67 : f32 to vector<2x32xf32>
      %c0_68 = arith.constant 0 : index
      %c0_69 = arith.constant 0 : index
      %60 = vector.load %arg8[%c0_68, %c0_69] : memref<2x32xf32, #tpu.memory_space<vmem>>, vector<2x32xf32>
      tpu.vector_store %arg8[%c0_68, %c0_69], %59 {strides = array<i32>} : memref<2x32xf32, #tpu.memory_space<vmem>>, vector<2x32xf32>,
    } else {
    }
    %c0 = arith.constant 0 : index
    %c0_1 = arith.constant 0 : index
    %c0_2 = arith.constant 0 : index
    %c0_3 = arith.constant 0 : index
    %3 = vector.load %arg1[%c0, %c0_1, %c0_2, %c0_3] : memref<1x16x16x32xf32, #tpu.memory_space<vmem>>, vector<1x16x16x32xf32>
    %4 = vector.shape_cast %3 : vector<1x16x16x32xf32> to vector<16x16x32xf32>
    %c1 = arith.constant 1 : index
    %c1_4 = arith.constant 1 : index
    %c0_5 = arith.constant 0 : index
    %5 = vector.load %arg6[%c1, %c1_4, %c0_5] : memref<18x18x32xf32, #tpu.memory_space<vmem>>, vector<16x16x32xf32>
    tpu.vector_store %arg6[%c1, %c1_4, %c0_5], %4 {strides = array<i32>} : memref<18x18x32xf32, #tpu.memory_space<vmem>>, vector<16x16x32xf32>,
    %c0_6 = arith.constant 0 : index
    %c0_7 = arith.constant 0 : index
    %c0_8 = arith.constant 0 : index
    %6 = vector.load %arg6[%c0_6, %c0_7, %c0_8] : memref<18x18x32xf32, #tpu.memory_space<vmem>>, vector<16x16x32xf32>
    %7 = vector.shape_cast %6 : vector<16x16x32xf32> to vector<256x32xf32>
    %c0_9 = arith.constant 0 : index
    %c0_10 = arith.constant 0 : index
    %8 = vector.load %arg7[%c0_9, %c0_10] : memref<256x288xf32, #tpu.memory_space<vmem>>, vector<256x32xf32>
    tpu.vector_store %arg7[%c0_9, %c0_10], %7 {strides = array<i32>} : memref<256x288xf32, #tpu.memory_space<vmem>>, vector<256x32xf32>,
    %c0_11 = arith.constant 0 : index
    %c1_12 = arith.constant 1 : index
    %c0_13 = arith.constant 0 : index
    %9 = vector.load %arg6[%c0_11, %c1_12, %c0_13] : memref<18x18x32xf32, #tpu.memory_space<vmem>>, vector<16x16x32xf32>
    %10 = vector.shape_cast %9 : vector<16x16x32xf32> to vector<256x32xf32>
    %c0_14 = arith.constant 0 : index
    %c32 = arith.constant 32 : index
    %11 = vector.load %arg7[%c0_14, %c32] : memref<256x288xf32, #tpu.memory_space<vmem>>, vector<256x32xf32>
    tpu.vector_store %arg7[%c0_14, %c32], %10 {strides = array<i32>} : memref<256x288xf32, #tpu.memory_space<vmem>>, vector<256x32xf32>,
    %c0_15 = arith.constant 0 : index
    %c2 = arith.constant 2 : index
    %c0_16 = arith.constant 0 : index
    %12 = vector.load %arg6[%c0_15, %c2, %c0_16] : memref<18x18x32xf32, #tpu.memory_space<vmem>>, vector<16x16x32xf32>
    %13 = vector.shape_cast %12 : vector<16x16x32xf32> to vector<256x32xf32>
    %c0_17 = arith.constant 0 : index
    %c64 = arith.constant 64 : index
    %14 = vector.load %arg7[%c0_17, %c64] : memref<256x288xf32, #tpu.memory_space<vmem>>, vector<256x32xf32>
    tpu.vector_store %arg7[%c0_17, %c64], %13 {strides = array<i32>} : memref<256x288xf32, #tpu.memory_space<vmem>>, vector<256x32xf32>,
    %c1_18 = arith.constant 1 : index
    %c0_19 = arith.constant 0 : index
    %c0_20 = arith.constant 0 : index
    %15 = vector.load %arg6[%c1_18, %c0_19, %c0_20] : memref<18x18x32xf32, #tpu.memory_space<vmem>>, vector<16x16x32xf32>
    %16 = vector.shape_cast %15 : vector<16x16x32xf32> to vector<256x32xf32>
    %c0_21 = arith.constant 0 : index
    %c96 = arith.constant 96 : index
    %17 = vector.load %arg7[%c0_21, %c96] : memref<256x288xf32, #tpu.memory_space<vmem>>, vector<256x32xf32>
    tpu.vector_store %arg7[%c0_21, %c96], %16 {strides = array<i32>} : memref<256x288xf32, #tpu.memory_space<vmem>>, vector<256x32xf32>,
    %c1_22 = arith.constant 1 : index
    %c1_23 = arith.constant 1 : index
    %c0_24 = arith.constant 0 : index
    %18 = vector.load %arg6[%c1_22, %c1_23, %c0_24] : memref<18x18x32xf32, #tpu.memory_space<vmem>>, vector<16x16x32xf32>
    %19 = vector.shape_cast %18 : vector<16x16x32xf32> to vector<256x32xf32>
    %c0_25 = arith.constant 0 : index
    %c128 = arith.constant 128 : index
    %20 = vector.load %arg7[%c0_25, %c128] : memref<256x288xf32, #tpu.memory_space<vmem>>, vector<256x32xf32>
    tpu.vector_store %arg7[%c0_25, %c128], %19 {strides = array<i32>} : memref<256x288xf32, #tpu.memory_space<vmem>>, vector<256x32xf32>,
    %c1_26 = arith.constant 1 : index
    %c2_27 = arith.constant 2 : index
    %c0_28 = arith.constant 0 : index
    %21 = vector.load %arg6[%c1_26, %c2_27, %c0_28] : memref<18x18x32xf32, #tpu.memory_space<vmem>>, vector<16x16x32xf32>
    %22 = vector.shape_cast %21 : vector<16x16x32xf32> to vector<256x32xf32>
    %c0_29 = arith.constant 0 : index
    %c160 = arith.constant 160 : index
    %23 = vector.load %arg7[%c0_29, %c160] : memref<256x288xf32, #tpu.memory_space<vmem>>, vector<256x32xf32>
    tpu.vector_store %arg7[%c0_29, %c160], %22 {strides = array<i32>} : memref<256x288xf32, #tpu.memory_space<vmem>>, vector<256x32xf32>,
    %c2_30 = arith.constant 2 : index
    %c0_31 = arith.constant 0 : index
    %c0_32 = arith.constant 0 : index
    %24 = vector.load %arg6[%c2_30, %c0_31, %c0_32] : memref<18x18x32xf32, #tpu.memory_space<vmem>>, vector<16x16x32xf32>
    %25 = vector.shape_cast %24 : vector<16x16x32xf32> to vector<256x32xf32>
    %c0_33 = arith.constant 0 : index
    %c192 = arith.constant 192 : index
    %26 = vector.load %arg7[%c0_33, %c192] : memref<256x288xf32, #tpu.memory_space<vmem>>, vector<256x32xf32>
    tpu.vector_store %arg7[%c0_33, %c192], %25 {strides = array<i32>} : memref<256x288xf32, #tpu.memory_space<vmem>>, vector<256x32xf32>,
    %c2_34 = arith.constant 2 : index
    %c1_35 = arith.constant 1 : index
    %c0_36 = arith.constant 0 : index
    %27 = vector.load %arg6[%c2_34, %c1_35, %c0_36] : memref<18x18x32xf32, #tpu.memory_space<vmem>>, vector<16x16x32xf32>
    %28 = vector.shape_cast %27 : vector<16x16x32xf32> to vector<256x32xf32>
    %c0_37 = arith.constant 0 : index
    %c224 = arith.constant 224 : index
    %29 = vector.load %arg7[%c0_37, %c224] : memref<256x288xf32, #tpu.memory_space<vmem>>, vector<256x32xf32>
    tpu.vector_store %arg7[%c0_37, %c224], %28 {strides = array<i32>} : memref<256x288xf32, #tpu.memory_space<vmem>>, vector<256x32xf32>,
    %c2_38 = arith.constant 2 : index
    %c2_39 = arith.constant 2 : index
    %c0_40 = arith.constant 0 : index
    %30 = vector.load %arg6[%c2_38, %c2_39, %c0_40] : memref<18x18x32xf32, #tpu.memory_space<vmem>>, vector<16x16x32xf32>
    %31 = vector.shape_cast %30 : vector<16x16x32xf32> to vector<256x32xf32>
    %c0_41 = arith.constant 0 : index
    %c256 = arith.constant 256 : index
    %32 = vector.load %arg7[%c0_41, %c256] : memref<256x288xf32, #tpu.memory_space<vmem>>, vector<256x32xf32>
    tpu.vector_store %arg7[%c0_41, %c256], %31 {strides = array<i32>} : memref<256x288xf32, #tpu.memory_space<vmem>>, vector<256x32xf32>,
    %c0_42 = arith.constant 0 : index
    %c0_43 = arith.constant 0 : index
    %33 = vector.load %arg7[%c0_42, %c0_43] : memref<256x288xf32, #tpu.memory_space<vmem>>, vector<256x288xf32>
    %c0_44 = arith.constant 0 : index
    %c0_45 = arith.constant 0 : index
    %34 = vector.load %arg2[%c0_44, %c0_45] : memref<288x32xf32, #tpu.memory_space<vmem>>, vector<288x32xf32>
    %cst = arith.constant dense<0.000000e+00> : vector<256x32xf32>
    %35 = tpu.matmul %33, %34, %cst {dimension_numbers = #tpu.dot_dimension_numbers<[1], [0], [0], [1], [0, 0, 1, 1], [], []>} : vector<256x288xf32>, vector<288x32xf32>, vector<256x32xf32> -> vector<256x32xf32>
    %c0_46 = arith.constant 0 : index
    %c0_47 = arith.constant 0 : index
    %36 = vector.load %arg3[%c0_46, %c0_47] : memref<1x32xf32, #tpu.memory_space<vmem>>, vector<1x32xf32>
    %37 = vector.broadcast %36 : vector<1x32xf32> to vector<256x32xf32>
    %38 = arith.addf %35, %37 : vector<256x32xf32>
    %39 = vector.shape_cast %38 : vector<256x32xf32> to vector<16x16x32xf32>
    %c0_48 = arith.constant 0 : index
    %c0_49 = arith.constant 0 : index
    %c0_50 = arith.constant 0 : index
    %c0_51 = arith.constant 0 : index
    %40 = vector.load %arg4[%c0_48, %c0_49, %c0_50, %c0_51] : memref<1x16x16x32xf32, #tpu.memory_space<vmem>>, vector<1x16x16x32xf32>
    %41 = vector.shape_cast %40 : vector<1x16x16x32xf32> to vector<16x16x32xf32>
    %42 = vector.shape_cast %39 : vector<16x16x32xf32> to vector<1x16x16x32xf32>
    tpu.vector_store %arg4[%c0_48, %c0_49, %c0_50, %c0_51], %42 {strides = array<i32>} : memref<1x16x16x32xf32, #tpu.memory_space<vmem>>, vector<1x16x16x32xf32>,
    %c0_52 = arith.constant 0 : index
    %c0_53 = arith.constant 0 : index
    %43 = vector.load %arg8[%c0_52, %c0_53] : memref<2x32xf32, #tpu.memory_space<vmem>>, vector<1x32xf32>
    %cst_54 = arith.constant dense<0.000000e+00> : vector<32xf32>
    %44 = vector.multi_reduction <add>, %38, %cst_54 [0] : vector<256x32xf32> to vector<32xf32>
    %45 = vector.shape_cast %44 : vector<32xf32> to vector<1x32xf32>
    %46 = arith.addf %43, %45 : vector<1x32xf32>
    %c0_55 = arith.constant 0 : index
    %c0_56 = arith.constant 0 : index
    %47 = vector.load %arg8[%c0_55, %c0_56] : memref<2x32xf32, #tpu.memory_space<vmem>>, vector<1x32xf32>
    tpu.vector_store %arg8[%c0_55, %c0_56], %46 {strides = array<i32>} : memref<2x32xf32, #tpu.memory_space<vmem>>, vector<1x32xf32>,
    %c1_57 = arith.constant 1 : index
    %c0_58 = arith.constant 0 : index
    %48 = vector.load %arg8[%c1_57, %c0_58] : memref<2x32xf32, #tpu.memory_space<vmem>>, vector<1x32xf32>
    %49 = arith.mulf %38, %38 : vector<256x32xf32>
    %cst_59 = arith.constant dense<0.000000e+00> : vector<32xf32>
    %50 = vector.multi_reduction <add>, %49, %cst_59 [0] : vector<256x32xf32> to vector<32xf32>
    %51 = vector.shape_cast %50 : vector<32xf32> to vector<1x32xf32>
    %52 = arith.addf %48, %51 : vector<1x32xf32>
    %c1_60 = arith.constant 1 : index
    %c0_61 = arith.constant 0 : index
    %53 = vector.load %arg8[%c1_60, %c0_61] : memref<2x32xf32, #tpu.memory_space<vmem>>, vector<1x32xf32>
    tpu.vector_store %arg8[%c1_60, %c0_61], %52 {strides = array<i32>} : memref<2x32xf32, #tpu.memory_space<vmem>>, vector<1x32xf32>,
    %c1_i32 = arith.constant 1 : i32
    %54 = arith.cmpi eq, %arg0, %c1_i32 : i32
    %55 = arith.extui %54 : i1 to i32
    %c0_i32_62 = arith.constant 0 : i32
    %56 = arith.cmpi ne, %55, %c0_i32_62 : i32
    scf.if %56 {
      %c0_63 = arith.constant 0 : index
      %c0_64 = arith.constant 0 : index
      %57 = vector.load %arg8[%c0_63, %c0_64] : memref<2x32xf32, #tpu.memory_space<vmem>>, vector<1x32xf32>
      %cst_65 = arith.constant 0.001953125 : f32
      %58 = vector.broadcast %cst_65 : f32 to vector<1x32xf32>
      %59 = arith.mulf %57, %58 : vector<1x32xf32>
      %c1_66 = arith.constant 1 : index
      %c0_67 = arith.constant 0 : index
      %60 = vector.load %arg8[%c1_66, %c0_67] : memref<2x32xf32, #tpu.memory_space<vmem>>, vector<1x32xf32>
      %cst_68 = arith.constant 0.001953125 : f32
      %61 = vector.broadcast %cst_68 : f32 to vector<1x32xf32>
      %62 = arith.mulf %60, %61 : vector<1x32xf32>
      %63 = arith.mulf %59, %59 : vector<1x32xf32>
      %64 = arith.subf %62, %63 : vector<1x32xf32>
      %c0_69 = arith.constant 0 : index
      %c0_70 = arith.constant 0 : index
      %65 = vector.load %arg5[%c0_69, %c0_70] : memref<2x32xf32, #tpu.memory_space<vmem>>, vector<1x32xf32>
      tpu.vector_store %arg5[%c0_69, %c0_70], %59 {strides = array<i32>} : memref<2x32xf32, #tpu.memory_space<vmem>>, vector<1x32xf32>,
      %cst_71 = arith.constant 9.99999974E-6 : f32
      %66 = vector.broadcast %cst_71 : f32 to vector<1x32xf32>
      %67 = arith.addf %64, %66 : vector<1x32xf32>
      %68 = math.rsqrt %67 : vector<1x32xf32>
      %c1_72 = arith.constant 1 : index
      %c0_73 = arith.constant 0 : index
      %69 = vector.load %arg5[%c1_72, %c0_73] : memref<2x32xf32, #tpu.memory_space<vmem>>, vector<1x32xf32>
      tpu.vector_store %arg5[%c1_72, %c0_73], %68 {strides = array<i32>} : memref<2x32xf32, #tpu.memory_space<vmem>>, vector<1x32xf32>,
    } else {
    }
    return
  }
  func.func @transform_0(%arg0: i32) -> (i32, i32, i32, i32) {
    %c0_i32 = arith.constant 0 : i32
    %c0_i32_0 = arith.constant 0 : i32
    %c0_i32_1 = arith.constant 0 : i32
    %c0_i32_2 = arith.constant 0 : i32
    return %arg0, %c0_i32, %c0_i32_0, %c0_i32_1 : i32, i32, i32, i32
  }
  func.func @transform_1(%arg0: i32) -> (i32, i32) {
    %c0_i32 = arith.constant 0 : i32
    %c0_i32_0 = arith.constant 0 : i32
    %c0_i32_1 = arith.constant 0 : i32
    return %c0_i32, %c0_i32_0 : i32, i32
  }
  func.func @transform_2(%arg0: i32) -> (i32, i32) {
    %c0_i32 = arith.constant 0 : i32
    %c0_i32_0 = arith.constant 0 : i32
    %c0_i32_1 = arith.constant 0 : i32
    return %c0_i32, %c0_i32_0 : i32, i32
  }
  func.func @transform_3(%arg0: i32) -> (i32, i32, i32, i32) {
    %c0_i32 = arith.constant 0 : i32
    %c0_i32_0 = arith.constant 0 : i32
    %c0_i32_1 = arith.constant 0 : i32
    %c0_i32_2 = arith.constant 0 : i32
    return %arg0, %c0_i32, %c0_i32_0, %c0_i32_1 : i32, i32, i32, i32
  }
  func.func @transform_4(%arg0: i32) -> (i32, i32) {
    %c0_i32 = arith.constant 0 : i32
    %c0_i32_0 = arith.constant 0 : i32
    %c0_i32_1 = arith.constant 0 : i32
    return %c0_i32, %c0_i32_0 : i32, i32
  }
}

</mosaic_0001>

<llo_original>
// kernel: tpu_custom_call.1
$region0: #{tpu_custom_call.1}
  #allocation0 [shape = 'u32[]', space=smem, size = 0x4, offset = 0x4, fixed_abs, tag = 'smem constant byte address 0x4 - core index']
  #allocation1 [shape = 'u32[144,128]{1,0:T(1,128)}', space=vmem, size = 0x12000, scoped, tag = 'internal scratch']
  #allocation2 [shape = 'f32[18,18,32]{2,1,0:T(8,128)}', space=vmem, size = 0x36000, scoped, tag = 'scratch operand']
  #allocation3 [shape = 'f32[256,288]{1,0:T(8,128)}', space=vmem, size = 0x60000, scoped, tag = 'scratch operand']
  #allocation4 [shape = 'f32[2,32]{1,0:T(2,128)}', space=vmem, size = 0x400, scoped, tag = 'scratch operand']
  %s0 = inlined_call_operand.hbm [shape: f32[2,16,16,32], index: 0, kind: input, shape index: {}]
  %s1 = inlined_call_operand.vmem [shape: f32[288,32], index: 1, kind: input, shape index: {}]
  %s2 = inlined_call_operand.vmem [shape: f32[1,32], index: 2, kind: input, shape index: {}]
  %s3 = inlined_call_operand.hbm [shape: f32[2,16,16,32], index: 3, kind: output, shape index: {0}]
  %s4 = inlined_call_operand.hbm [shape: f32[2,32], index: 4, kind: output, shape index: {1}]
  %5 = xla_tuple %s3, %s4
  %s6 = sld [smem:[#allocation0]]
  $region65: #{tpu_custom_call.1} parent=0
    _
  %s8 = ssub.s32 1, %s6
  %s9 = scalar_select 0, %s8, %s6
  $region1: #{tpu_custom_call.1} parent=0
    #allocation5 [shape = 'u8[262144]{0}', space=vmem, size = 0x40000, scoped, tag = 'input window, operand 0']
    #allocation6 [shape = 's32[2]{0}', space=sflag, size = 0x8, scoped, tag = 'scoped memory for tpu_custom_call.1']
    #allocation7 [shape = 's32[2]{0}', space=sflag, size = 0x8, scoped, tag = 'scoped memory for tpu_custom_call.1']
    #allocation8 [shape = 'u8[262144]{0}', space=vmem, size = 0x40000, scoped, tag = 'output window, operand 0']
    #allocation9 [shape = 'u8[1024]{0}', space=vmem, size = 0x400, scoped, tag = 'output window, operand 1, single buffered']
    #allocation10 [shape = 's32[1]{0}', space=sflag, size = 0x4, scoped, tag = 'scoped memory for tpu_custom_call.1']
    %10 = vsyncpa [#allocation6], 0
    %s11 = scalar_lea.sflag [#allocation6], 1
    %12 = vsyncpa %s11, 0
    %13 = vsyncpa [#allocation7], 0
    %s14 = scalar_lea.sflag [#allocation7], 1
    %15 = vsyncpa %s14, 0
    %16 = vsyncpa [#allocation10], 0
    loop: start=0, step=1, limit=4
    $region2: #{tpu_custom_call.1} parent=1 // loop_pre_header
      _
    $region3: #{tpu_custom_call.1} parent=1 // loop_header
      %s18 = sphi 0, %s22
      %p19 = scmp.ge.s32.totalorder %s18, 4
      %s28 = sphi 0, %s30
      %s31 = sphi 0, %s28
      %s32 = sphi 0, %s31
      %s48 = sphi 0, %s32
      %s52 = sphi 0, %s52
      %s54 = sphi 0, %s52
      %s55 = sphi 0, %s54
      %s69 = sphi 0, %s55
      %s73 = sphi 0, %s73
      %s75 = sphi 0, %s73
      %s76 = sphi 0, %s75
      %s90 = sphi 0, %s76
      %s96 = sphi 0, %s98
      %s99 = sphi 0, %s96
      %s100 = sphi 0, %s99
      %s116 = sphi 0, %s100
      %s120 = sphi 0, %s120
      %s122 = sphi 0, %s120
      %s123 = sphi 0, %s122
      %s137 = sphi 0, %s123
    $region4: #{tpu_custom_call.1} parent=1 // loop_header_branch
      %21 = sbr.rel (%p19) target = $region8
    $region5: #{tpu_custom_call.1} parent=1 // loop_body
      %s23 = ssub.s32 %s18, 1
      %s24 = ssub.s32 %s18, 2
      %s25 = sadd.s32 %s18, 1
      %s26 = ssub.s32 %s18, %s25
      %p27 = scmp.eq.s32.totalorder %s26, 0
      %s29 = sadd.s32 %s28, 1
      %s30 = scalar_select %p27, %s28, %s29
      %p33 = pneg %p27
      %p34 = scmp.eq.s32.totalorder %s18, 1
      %p35 = por %p33, %p34
      %p36 = scmp.ne.s32.totalorder %s28, %s31
      %p37 = scmp.eq.s32.totalorder %s18, 0
      %p38 = por %p36, %p37
      %p39 = scmp.ne.s32.totalorder %s28, %s31
      %p40 = scmp.eq.s32.totalorder %s23, 1
      %p41 = por %p39, %p40
      %p42 = scmp.ne.s32.totalorder %s31, %s32
      %p43 = scmp.eq.s32.totalorder %s23, 0
      %p44 = por %p42, %p43
      %p45 = scmp.ne.s32.totalorder %s31, %s32
      %p46 = scmp.eq.s32.totalorder %s24, 1
      %p47 = por %p45, %p46
      %p49 = scmp.ne.s32.totalorder %s32, %s48
      %p50 = scmp.eq.s32.totalorder %s24, 0
      %p51 = por %p49, %p50
      %s53 = sadd.s32 %s52, 1
      %p56 = scmp.eq.s32.totalorder %s18, 1
      %p57 = scmp.ne.s32.totalorder %s52, %s54
      %p58 = scmp.eq.s32.totalorder %s18, 0
      %p59 = por %p57, %p58
      %p60 = scmp.ne.s32.totalorder %s52, %s54
      %p61 = scmp.eq.s32.totalorder %s23, 1
      %p62 = por %p60, %p61
      %p63 = scmp.ne.s32.totalorder %s54, %s55
      %p64 = scmp.eq.s32.totalorder %s23, 0
      %p65 = por %p63, %p64
      %p66 = scmp.ne.s32.totalorder %s54, %s55
      %p67 = scmp.eq.s32.totalorder %s24, 1
      %p68 = por %p66, %p67
      %p70 = scmp.ne.s32.totalorder %s55, %s69
      %p71 = scmp.eq.s32.totalorder %s24, 0
      %p72 = por %p70, %p71
      %s74 = sadd.s32 %s73, 1
      %p77 = scmp.eq.s32.totalorder %s18, 1
      %p78 = scmp.ne.s32.totalorder %s73, %s75
      %p79 = scmp.eq.s32.totalorder %s18, 0
      %p80 = por %p78, %p79
      %p81 = scmp.ne.s32.totalorder %s73, %s75
      %p82 = scmp.eq.s32.totalorder %s23, 1
      %p83 = por %p81, %p82
      %p84 = scmp.ne.s32.totalorder %s75, %s76
      %p85 = scmp.eq.s32.totalorder %s23, 0
      %p86 = por %p84, %p85
      %p87 = scmp.ne.s32.totalorder %s75, %s76
      %p88 = scmp.eq.s32.totalorder %s24, 1
      %p89 = por %p87, %p88
      %p91 = scmp.ne.s32.totalorder %s76, %s90
      %p92 = scmp.eq.s32.totalorder %s24, 0
      %p93 = por %p91, %p92
      %s94 = ssub.s32 %s18, %s25
      %p95 = scmp.eq.s32.totalorder %s94, 0
      %s97 = sadd.s32 %s96, 1
      %s98 = scalar_select %p95, %s96, %s97
      %p101 = pneg %p95
      %p102 = scmp.eq.s32.totalorder %s18, 1
      %p103 = por %p101, %p102
      %p104 = scmp.ne.s32.totalorder %s96, %s99
      %p105 = scmp.eq.s32.totalorder %s18, 0
      %p106 = por %p104, %p105
      %p107 = scmp.ne.s32.totalorder %s96, %s99
      %p108 = scmp.eq.s32.totalorder %s23, 1
      %p109 = por %p107, %p108
      %p110 = scmp.ne.s32.totalorder %s99, %s100
      %p111 = scmp.eq.s32.totalorder %s23, 0
      %p112 = por %p110, %p111
      %p113 = scmp.ne.s32.totalorder %s99, %s100
      %p114 = scmp.eq.s32.totalorder %s24, 1
      %p115 = por %p113, %p114
      %p117 = scmp.ne.s32.totalorder %s100, %s116
      %p118 = scmp.eq.s32.totalorder %s24, 0
      %p119 = por %p117, %p118
      %s121 = sadd.s32 %s120, 1
      %p124 = scmp.eq.s32.totalorder %s18, 1
      %p125 = scmp.ne.s32.totalorder %s120, %s122
      %p126 = scmp.eq.s32.totalorder %s18, 0
      %p127 = por %p125, %p126
      %p128 = scmp.ne.s32.totalorder %s120, %s122
      %p129 = scmp.eq.s32.totalorder %s23, 1
      %p130 = por %p128, %p129
      %p131 = scmp.ne.s32.totalorder %s122, %s123
      %p132 = scmp.eq.s32.totalorder %s23, 0
      %p133 = por %p131, %p132
      %p134 = scmp.ne.s32.totalorder %s122, %s123
      %p135 = scmp.eq.s32.totalorder %s24, 1
      %p136 = por %p134, %p135
      %p138 = scmp.ne.s32.totalorder %s123, %s137
      %p139 = scmp.eq.s32.totalorder %s24, 0
      %p140 = por %p138, %p139
      %p141 = scmp.le.s32.totalorder 1, %s18
      %p142 = scmp.lt.s32.totalorder %s18, 3
      %p143 = pnand %p141, %p142
      %p144 = pneg %p143
      // Predicated region
      $region9: #{tpu_custom_call.1} parent=5 // pred_check
        _
      $region10: #{tpu_custom_call.1} parent=5 // pred_check_branch
        %146 = sbr.rel (%p143) target = $region12
      $region11: #{tpu_custom_call.1} parent=5 // pred_region
        %s147 = ssub.s32 %s18, 1
        // Predicated region
        $region13: #{tpu_custom_call.1} parent=11 // pred_check
          %p148 = pneg %p65
        $region14: #{tpu_custom_call.1} parent=11 // pred_check_branch
          %150 = sbr.rel (%p148) target = $region16
        $region15: #{tpu_custom_call.1} parent=11 // pred_region
          _
        $region16: #{tpu_custom_call.1} parent=11 // pred_fallthru
          _
        // Predicated region
        $region17: #{tpu_custom_call.1} parent=11 // pred_check
          %p151 = pneg %p86
        $region18: #{tpu_custom_call.1} parent=11 // pred_check_branch
          %153 = sbr.rel (%p151) target = $region20
        $region19: #{tpu_custom_call.1} parent=11 // pred_region
          _
        $region20: #{tpu_custom_call.1} parent=11 // pred_fallthru
          _
      $region12: #{tpu_custom_call.1} parent=5 // pred_fallthru
        _
      %p154 = scmp.lt.s32.totalorder %s18, 2
      // Predicated region
      $region21: #{tpu_custom_call.1} parent=5 // pred_check
        %p155 = pneg %p154
      $region22: #{tpu_custom_call.1} parent=5 // pred_check_branch
        %157 = sbr.rel (%p155) target = $region24
      $region23: #{tpu_custom_call.1} parent=5 // pred_region
        // Predicated region
        $region25: #{tpu_custom_call.1} parent=23 // pred_check
          %p158 = pneg %p38
        $region26: #{tpu_custom_call.1} parent=23 // pred_check_branch
          %160 = sbr.rel (%p158) target = $region28
        $region27: #{tpu_custom_call.1} parent=23 // pred_region
          %s161 = sand.u32 %s28, 1
          %s162 = scalar_lea.sflag [#allocation6], %s161
          %s163 = sand.u32 %s28, 1
          %s164 = smul.addr %s163, 256
          %s165 = scalar_lea.vmem [#allocation5], %s164
          %s167 = ssub.s32 4096, 4096
          %168 = vsyncadd %s162, %s167
          %s169 = smul.addr %s18, 32
          %s170 = smul.addr %s169, 128
          %s171 = scalar_lea.hbm %s0, %s170
          %s172 = sshll.u32 %s165, 4
          %s173 = int_to_ptr.vmem [resolvable:$true] %s172
          %178 = dma.hbm_to_vmem [thread:$0]  %s171, 4096, %s173, %s162, 128, 128, 8
        $region28: #{tpu_custom_call.1} parent=23 // pred_fallthru
          _
      $region24: #{tpu_custom_call.1} parent=5 // pred_fallthru
        _
      %p179 = scmp.le.s32.totalorder 1, %s18
      %p180 = scmp.lt.s32.totalorder %s18, 3
      %p181 = pnand %p179, %p180
      %p182 = pneg %p181
      // Predicated region
      $region29: #{tpu_custom_call.1} parent=5 // pred_check
        _
      $region30: #{tpu_custom_call.1} parent=5 // pred_check_branch
        %184 = sbr.rel (%p181) target = $region32
      $region31: #{tpu_custom_call.1} parent=5 // pred_region
        %s185 = ssub.s32 %s18, 1
        %s186 = sand.u32 %s31, 1
        %s187 = scalar_lea.sflag [#allocation6], %s186
        %s188 = sand.u32 %s31, 1
        %s189 = smul.addr %s188, 256
        %s190 = scalar_lea.vmem [#allocation5], %s189
        // Predicated region
        $region33: #{tpu_custom_call.1} parent=31 // pred_check
          %p191 = pneg %p44
        $region34: #{tpu_custom_call.1} parent=31 // pred_check_branch
          %193 = sbr.rel (%p191) target = $region36
        $region35: #{tpu_custom_call.1} parent=31 // pred_region
          %194 = dma.done %s187, 4096
        $region36: #{tpu_custom_call.1} parent=31 // pred_fallthru
          _
        %s195 = sand.u32 %s31, 1
        %s196 = scalar_lea.sflag [#allocation6], %s195
        %s197 = sand.u32 %s31, 1
        %s198 = smul.addr %s197, 256
        %s199 = scalar_lea.vmem [#allocation5], %s198
        %p200 = pneg %p44
        %p201 = pneg %p41
        %p202 = pneg %p65
        %p203 = pneg %p62
        %p204 = pneg %p86
        %p205 = pneg %p83
        %p206 = pneg %p112
        %p207 = pneg %p109
        %s208 = sand.u32 %s99, 1
        %s209 = scalar_lea.sflag [#allocation7], %s208
        %s210 = sand.u32 %s99, 1
        %s211 = smul.addr %s210, 256
        %s212 = scalar_lea.vmem [#allocation8], %s211
        %p213 = pneg %p133
        %p214 = pneg %p130
        %p215 = scmp.eq.s32.totalorder %s23, 0
        // Predicated region
        $region37: #{tpu_custom_call.1} parent=31 // pred_check
          %p216 = pneg %p215
        $region38: #{tpu_custom_call.1} parent=31 // pred_check_branch
          %218 = sbr.rel (%p216) target = $region40
        $region39: #{tpu_custom_call.1} parent=31 // pred_region
          %vm219 = vcmask 261120
          %220 = vst.msk [vmem:[#allocation2] sm:$0xff] %vm219, 0.0
          %221 = vst.msk [vmem:[#allocation2 + $0x8] sm:$0xff] %vm219, 0.0
          %vm222 = vcmask 254976
          %223 = vst.msk [vmem:[#allocation2 + $0x10] sm:$0x3] %vm222, 0.0
          %224 = vst.msk [vmem:[#allocation2 + $0x18] sm:$0xff] %vm219, 0.0
          %225 = vst.msk [vmem:[#allocation2 + $0x20] sm:$0xff] %vm219, 0.0
          %226 = vst.msk [vmem:[#allocation2 + $0x28] sm:$0x3] %vm222, 0.0
          %227 = vst.msk [vmem:[#allocation2 + $0x30] sm:$0xff] %vm219, 0.0
          %228 = vst.msk [vmem:[#allocation2 + $0x38] sm:$0xff] %vm219, 0.0
          %229 = vst.msk [vmem:[#allocation2 + $0x40] sm:$0x3] %vm222, 0.0
          %230 = vst.msk [vmem:[#allocation2 + $0x48] sm:$0xff] %vm219, 0.0
          %231 = vst.msk [vmem:[#allocation2 + $0x50] sm:$0xff] %vm219, 0.0
          %232 = vst.msk [vmem:[#allocation2 + $0x58] sm:$0x3] %vm222, 0.0
          %233 = vst.msk [vmem:[#allocation2 + $0x60] sm:$0xff] %vm219, 0.0
          %234 = vst.msk [vmem:[#allocation2 + $0x68] sm:$0xff] %vm219, 0.0
          %235 = vst.msk [vmem:[#allocation2 + $0x70] sm:$0x3] %vm222, 0.0
          %236 = vst.msk [vmem:[#allocation2 + $0x78] sm:$0xff] %vm219, 0.0
          %237 = vst.msk [vmem:[#allocation2 + $0x80] sm:$0xff] %vm219, 0.0
          %238 = vst.msk [vmem:[#allocation2 + $0x88] sm:$0x3] %vm222, 0.0
          %239 = vst.msk [vmem:[#allocation2 + $0x90] sm:$0xff] %vm219, 0.0
          %240 = vst.msk [vmem:[#allocation2 + $0x98] sm:$0xff] %vm219, 0.0
          %241 = vst.msk [vmem:[#allocation2 + $0xa0] sm:$0x3] %vm222, 0.0
          %242 = vst.msk [vmem:[#allocation2 + $0xa8] sm:$0xff] %vm219, 0.0
          %243 = vst.msk [vmem:[#allocation2 + $0xb0] sm:$0xff] %vm219, 0.0
          %244 = vst.msk [vmem:[#allocation2 + $0xb8] sm:$0x3] %vm222, 0.0
          %245 = vst.msk [vmem:[#allocation2 + $0xc0] sm:$0xff] %vm219, 0.0
          %246 = vst.msk [vmem:[#allocation2 + $0xc8] sm:$0xff] %vm219, 0.0
          %247 = vst.msk [vmem:[#allocation2 + $0xd0] sm:$0x3] %vm222, 0.0
          %248 = vst.msk [vmem:[#allocation2 + $0xd8] sm:$0xff] %vm219, 0.0
          %249 = vst.msk [vmem:[#allocation2 + $0xe0] sm:$0xff] %vm219, 0.0
          %250 = vst.msk [vmem:[#allocation2 + $0xe8] sm:$0x3] %vm222, 0.0
          %251 = vst.msk [vmem:[#allocation2 + $0xf0] sm:$0xff] %vm219, 0.0
          %252 = vst.msk [vmem:[#allocation2 + $0xf8] sm:$0xff] %vm219, 0.0
          %253 = vst.msk [vmem:[#allocation2 + $0x100] sm:$0x3] %vm222, 0.0
          %254 = vst.msk [vmem:[#allocation2 + $0x108] sm:$0xff] %vm219, 0.0
          %255 = vst.msk [vmem:[#allocation2 + $0x110] sm:$0xff] %vm219, 0.0
          %256 = vst.msk [vmem:[#allocation2 + $0x118] sm:$0x3] %vm222, 0.0
          %257 = vst.msk [vmem:[#allocation2 + $0x120] sm:$0xff] %vm219, 0.0
          %258 = vst.msk [vmem:[#allocation2 + $0x128] sm:$0xff] %vm219, 0.0
          %259 = vst.msk [vmem:[#allocation2 + $0x130] sm:$0x3] %vm222, 0.0
          %260 = vst.msk [vmem:[#allocation2 + $0x138] sm:$0xff] %vm219, 0.0
          %261 = vst.msk [vmem:[#allocation2 + $0x140] sm:$0xff] %vm219, 0.0
          %262 = vst.msk [vmem:[#allocation2 + $0x148] sm:$0x3] %vm222, 0.0
          %263 = vst.msk [vmem:[#allocation2 + $0x150] sm:$0xff] %vm219, 0.0
          %264 = vst.msk [vmem:[#allocation2 + $0x158] sm:$0xff] %vm219, 0.0
          %265 = vst.msk [vmem:[#allocation2 + $0x160] sm:$0x3] %vm222, 0.0
          %266 = vst.msk [vmem:[#allocation2 + $0x168] sm:$0xff] %vm219, 0.0
          %267 = vst.msk [vmem:[#allocation2 + $0x170] sm:$0xff] %vm219, 0.0
          %268 = vst.msk [vmem:[#allocation2 + $0x178] sm:$0x3] %vm222, 0.0
          %269 = vst.msk [vmem:[#allocation2 + $0x180] sm:$0xff] %vm219, 0.0
          %270 = vst.msk [vmem:[#allocation2 + $0x188] sm:$0xff] %vm219, 0.0
          %271 = vst.msk [vmem:[#allocation2 + $0x190] sm:$0x3] %vm222, 0.0
          %272 = vst.msk [vmem:[#allocation2 + $0x198] sm:$0xff] %vm219, 0.0
          %273 = vst.msk [vmem:[#allocation2 + $0x1a0] sm:$0xff] %vm219, 0.0
          %274 = vst.msk [vmem:[#allocation2 + $0x1a8] sm:$0x3] %vm222, 0.0
          %275 = vst.msk [vmem:[#allocation4] sm:$0x3] %vm222, 0.0
        $region40: #{tpu_custom_call.1} parent=31 // pred_fallthru
          _
        %v276 = vld [vmem:[%s190] sm:$0xff]
        %v277 = vld [vmem:[%s190 + $0x8] sm:$0xff]
        %v278 = vld [vmem:[%s190 + $0x10] sm:$0xff]
        %v279 = vld [vmem:[%s190 + $0x18] sm:$0xff]
        %v280 = vld [vmem:[%s190 + $0x20] sm:$0xff]
        %v281 = vld [vmem:[%s190 + $0x28] sm:$0xff]
        %v282 = vld [vmem:[%s190 + $0x30] sm:$0xff]
        %v283 = vld [vmem:[%s190 + $0x38] sm:$0xff]
        %v284 = vld [vmem:[%s190 + $0x40] sm:$0xff]
        %v285 = vld [vmem:[%s190 + $0x48] sm:$0xff]
        %v286 = vld [vmem:[%s190 + $0x50] sm:$0xff]
        %v287 = vld [vmem:[%s190 + $0x58] sm:$0xff]
        %v288 = vld [vmem:[%s190 + $0x60] sm:$0xff]
        %v289 = vld [vmem:[%s190 + $0x68] sm:$0xff]
        %v290 = vld [vmem:[%s190 + $0x70] sm:$0xff]
        %v291 = vld [vmem:[%s190 + $0x78] sm:$0xff]
        %v292 = vld [vmem:[%s190 + $0x80] sm:$0xff]
        %v293 = vld [vmem:[%s190 + $0x88] sm:$0xff]
        %v294 = vld [vmem:[%s190 + $0x90] sm:$0xff]
        %v295 = vld [vmem:[%s190 + $0x98] sm:$0xff]
        %v296 = vld [vmem:[%s190 + $0xa0] sm:$0xff]
        %v297 = vld [vmem:[%s190 + $0xa8] sm:$0xff]
        %v298 = vld [vmem:[%s190 + $0xb0] sm:$0xff]
        %v299 = vld [vmem:[%s190 + $0xb8] sm:$0xff]
        %v300 = vld [vmem:[%s190 + $0xc0] sm:$0xff]
        %v301 = vld [vmem:[%s190 + $0xc8] sm:$0xff]
        %v302 = vld [vmem:[%s190 + $0xd0] sm:$0xff]
        %v303 = vld [vmem:[%s190 + $0xd8] sm:$0xff]
        %v304 = vld [vmem:[%s190 + $0xe0] sm:$0xff]
        %v305 = vld [vmem:[%s190 + $0xe8] sm:$0xff]
        %v306 = vld [vmem:[%s190 + $0xf0] sm:$0xff]
        %v307 = vld [vmem:[%s190 + $0xf8] sm:$0xff]
        %s308 = scalar_lea.vmem [#allocation2], 24
        %vm309 = vcmask 261120
        %310 = vst.msk [vmem:[%s308 + $0x1] sm:$0xff] %vm309, %v276
        %311 = vst.msk [vmem:[%s308 + $0x9] sm:$0xff] %vm309, %v277
        %312 = vst.msk [vmem:[%s308 + $0x19] sm:$0xff] %vm309, %v278
        %313 = vst.msk [vmem:[%s308 + $0x21] sm:$0xff] %vm309, %v279
        %314 = vst.msk [vmem:[%s308 + $0x31] sm:$0xff] %vm309, %v280
        %315 = vst.msk [vmem:[%s308 + $0x39] sm:$0xff] %vm309, %v281
        %316 = vst.msk [vmem:[%s308 + $0x49] sm:$0xff] %vm309, %v282
        %317 = vst.msk [vmem:[%s308 + $0x51] sm:$0xff] %vm309, %v283
        %318 = vst.msk [vmem:[%s308 + $0x61] sm:$0xff] %vm309, %v284
        %319 = vst.msk [vmem:[%s308 + $0x69] sm:$0xff] %vm309, %v285
        %320 = vst.msk [vmem:[%s308 + $0x79] sm:$0xff] %vm309, %v286
        %321 = vst.msk [vmem:[%s308 + $0x81] sm:$0xff] %vm309, %v287
        %322 = vst.msk [vmem:[%s308 + $0x91] sm:$0xff] %vm309, %v288
        %323 = vst.msk [vmem:[%s308 + $0x99] sm:$0xff] %vm309, %v289
        %324 = vst.msk [vmem:[%s308 + $0xa9] sm:$0xff] %vm309, %v290
        %325 = vst.msk [vmem:[%s308 + $0xb1] sm:$0xff] %vm309, %v291
        %326 = vst.msk [vmem:[%s308 + $0xc1] sm:$0xff] %vm309, %v292
        %327 = vst.msk [vmem:[%s308 + $0xc9] sm:$0xff] %vm309, %v293
        %328 = vst.msk [vmem:[%s308 + $0xd9] sm:$0xff] %vm309, %v294
        %329 = vst.msk [vmem:[%s308 + $0xe1] sm:$0xff] %vm309, %v295
        %330 = vst.msk [vmem:[%s308 + $0xf1] sm:$0xff] %vm309, %v296
        %331 = vst.msk [vmem:[%s308 + $0xf9] sm:$0xff] %vm309, %v297
        %332 = vst.msk [vmem:[%s308 + $0x109] sm:$0xff] %vm309, %v298
        %333 = vst.msk [vmem:[%s308 + $0x111] sm:$0xff] %vm309, %v299
        %334 = vst.msk [vmem:[%s308 + $0x121] sm:$0xff] %vm309, %v300
        %335 = vst.msk [vmem:[%s308 + $0x129] sm:$0xff] %vm309, %v301
        %336 = vst.msk [vmem:[%s308 + $0x139] sm:$0xff] %vm309, %v302
        %337 = vst.msk [vmem:[%s308 + $0x141] sm:$0xff] %vm309, %v303
        %338 = vst.msk [vmem:[%s308 + $0x151] sm:$0xff] %vm309, %v304
        %339 = vst.msk [vmem:[%s308 + $0x159] sm:$0xff] %vm309, %v305
        %340 = vst.msk [vmem:[%s308 + $0x169] sm:$0xff] %vm309, %v306
        %341 = vst.msk [vmem:[%s308 + $0x171] sm:$0xff] %vm309, %v307
        %v342 = vld [vmem:[#allocation2] sm:$0xff]
        %v343 = vld [vmem:[#allocation2 + $0x8] sm:$0xff]
        %v344 = vld [vmem:[#allocation2 + $0x18] sm:$0xff]
        %v345 = vld [vmem:[#allocation2 + $0x20] sm:$0xff]
        %v346 = vld [vmem:[#allocation2 + $0x30] sm:$0xff]
        %v347 = vld [vmem:[#allocation2 + $0x38] sm:$0xff]
        %v348 = vld [vmem:[#allocation2 + $0x48] sm:$0xff]
        %v349 = vld [vmem:[#allocation2 + $0x50] sm:$0xff]
        %v350 = vld [vmem:[#allocation2 + $0x60] sm:$0xff]
        %v351 = vld [vmem:[#allocation2 + $0x68] sm:$0xff]
        %v352 = vld [vmem:[#allocation2 + $0x78] sm:$0xff]
        %v353 = vld [vmem:[#allocation2 + $0x80] sm:$0xff]
        %v354 = vld [vmem:[#allocation2 + $0x90] sm:$0xff]
        %v355 = vld [vmem:[#allocation2 + $0x98] sm:$0xff]
        %v356 = vld [vmem:[#allocation2 + $0xa8] sm:$0xff]
        %v357 = vld [vmem:[#allocation2 + $0xb0] sm:$0xff]
        %v358 = vld [vmem:[#allocation2 + $0xc0] sm:$0xff]
        %v359 = vld [vmem:[#allocation2 + $0xc8] sm:$0xff]
        %v360 = vld [vmem:[#allocation2 + $0xd8] sm:$0xff]
        %v361 = vld [vmem:[#allocation2 + $0xe0] sm:$0xff]
        %v362 = vld [vmem:[#allocation2 + $0xf0] sm:$0xff]
        %v363 = vld [vmem:[#allocation2 + $0xf8] sm:$0xff]
        %v364 = vld [vmem:[#allocation2 + $0x108] sm:$0xff]
        %v365 = vld [vmem:[#allocation2 + $0x110] sm:$0xff]
        %v366 = vld [vmem:[#allocation2 + $0x120] sm:$0xff]
        %v367 = vld [vmem:[#allocation2 + $0x128] sm:$0xff]
        %v368 = vld [vmem:[#allocation2 + $0x138] sm:$0xff]
        %v369 = vld [vmem:[#allocation2 + $0x140] sm:$0xff]
        %v370 = vld [vmem:[#allocation2 + $0x150] sm:$0xff]
        %v371 = vld [vmem:[#allocation2 + $0x158] sm:$0xff]
        %v372 = vld [vmem:[#allocation2 + $0x168] sm:$0xff]
        %v373 = vld [vmem:[#allocation2 + $0x170] sm:$0xff]
        %374 = vst.msk [vmem:[#allocation3] sm:$0xff] %vm309, %v342
        %375 = vst.msk [vmem:[#allocation3 + $0x18] sm:$0xff] %vm309, %v343
        %376 = vst.msk [vmem:[#allocation3 + $0x30] sm:$0xff] %vm309, %v344
        %377 = vst.msk [vmem:[#allocation3 + $0x48] sm:$0xff] %vm309, %v345
        %378 = vst.msk [vmem:[#allocation3 + $0x60] sm:$0xff] %vm309, %v346
        %379 = vst.msk [vmem:[#allocation3 + $0x78] sm:$0xff] %vm309, %v347
        %380 = vst.msk [vmem:[#allocation3 + $0x90] sm:$0xff] %vm309, %v348
        %381 = vst.msk [vmem:[#allocation3 + $0xa8] sm:$0xff] %vm309, %v349
        %382 = vst.msk [vmem:[#allocation3 + $0xc0] sm:$0xff] %vm309, %v350
        %383 = vst.msk [vmem:[#allocation3 + $0xd8] sm:$0xff] %vm309, %v351
        %384 = vst.msk [vmem:[#allocation3 + $0xf0] sm:$0xff] %vm309, %v352
        %385 = vst.msk [vmem:[#allocation3 + $0x108] sm:$0xff] %vm309, %v353
        %386 = vst.msk [vmem:[#allocation3 + $0x120] sm:$0xff] %vm309, %v354
        %387 = vst.msk [vmem:[#allocation3 + $0x138] sm:$0xff] %vm309, %v355
        %388 = vst.msk [vmem:[#allocation3 + $0x150] sm:$0xff] %vm309, %v356
        %389 = vst.msk [vmem:[#allocation3 + $0x168] sm:$0xff] %vm309, %v357
        %390 = vst.msk [vmem:[#allocation3 + $0x180] sm:$0xff] %vm309, %v358
        %391 = vst.msk [vmem:[#allocation3 + $0x198] sm:$0xff] %vm309, %v359
        %392 = vst.msk [vmem:[#allocation3 + $0x1b0] sm:$0xff] %vm309, %v360
        %393 = vst.msk [vmem:[#allocation3 + $0x1c8] sm:$0xff] %vm309, %v361
        %394 = vst.msk [vmem:[#allocation3 + $0x1e0] sm:$0xff] %vm309, %v362
        %395 = vst.msk [vmem:[#allocation3 + $0x1f8] sm:$0xff] %vm309, %v363
        %396 = vst.msk [vmem:[#allocation3 + $0x210] sm:$0xff] %vm309, %v364
        %397 = vst.msk [vmem:[#allocation3 + $0x228] sm:$0xff] %vm309, %v365
        %398 = vst.msk [vmem:[#allocation3 + $0x240] sm:$0xff] %vm309, %v366
        %399 = vst.msk [vmem:[#allocation3 + $0x258] sm:$0xff] %vm309, %v367
        %400 = vst.msk [vmem:[#allocation3 + $0x270] sm:$0xff] %vm309, %v368
        %401 = vst.msk [vmem:[#allocation3 + $0x288] sm:$0xff] %vm309, %v369
        %402 = vst.msk [vmem:[#allocation3 + $0x2a0] sm:$0xff] %vm309, %v370
        %403 = vst.msk [vmem:[#allocation3 + $0x2b8] sm:$0xff] %vm309, %v371
        %404 = vst.msk [vmem:[#allocation3 + $0x2d0] sm:$0xff] %vm309, %v372
        %405 = vst.msk [vmem:[#allocation3 + $0x2e8] sm:$0xff] %vm309, %v373
        %v406 = vld [vmem:[#allocation2 + $0x1] sm:$0xff]
        %v407 = vld [vmem:[#allocation2 + $0x9] sm:$0xff]
        %v408 = vld [vmem:[#allocation2 + $0x19] sm:$0xff]
        %v409 = vld [vmem:[#allocation2 + $0x21] sm:$0xff]
        %v410 = vld [vmem:[#allocation2 + $0x31] sm:$0xff]
        %v411 = vld [vmem:[#allocation2 + $0x39] sm:$0xff]
        %v412 = vld [vmem:[#allocation2 + $0x49] sm:$0xff]
        %v413 = vld [vmem:[#allocation2 + $0x51] sm:$0xff]
        %v414 = vld [vmem:[#allocation2 + $0x61] sm:$0xff]
        %v415 = vld [vmem:[#allocation2 + $0x69] sm:$0xff]
        %v416 = vld [vmem:[#allocation2 + $0x79] sm:$0xff]
        %v417 = vld [vmem:[#allocation2 + $0x81] sm:$0xff]
        %v418 = vld [vmem:[#allocation2 + $0x91] sm:$0xff]
        %v419 = vld [vmem:[#allocation2 + $0x99] sm:$0xff]
        %v420 = vld [vmem:[#allocation2 + $0xa9] sm:$0xff]
        %v421 = vld [vmem:[#allocation2 + $0xb1] sm:$0xff]
        %v422 = vld [vmem:[#allocation2 + $0xc1] sm:$0xff]
        %v423 = vld [vmem:[#allocation2 + $0xc9] sm:$0xff]
        %v424 = vld [vmem:[#allocation2 + $0xd9] sm:$0xff]
        %v425 = vld [vmem:[#allocation2 + $0xe1] sm:$0xff]
        %v426 = vld [vmem:[#allocation2 + $0xf1] sm:$0xff]
        %v427 = vld [vmem:[#allocation2 + $0xf9] sm:$0xff]
        %v428 = vld [vmem:[#allocation2 + $0x109] sm:$0xff]
        %v429 = vld [vmem:[#allocation2 + $0x111] sm:$0xff]
        %v430 = vld [vmem:[#allocation2 + $0x121] sm:$0xff]
        %v431 = vld [vmem:[#allocation2 + $0x129] sm:$0xff]
        %v432 = vld [vmem:[#allocation2 + $0x139] sm:$0xff]
        %v433 = vld [vmem:[#allocation2 + $0x141] sm:$0xff]
        %v434 = vld [vmem:[#allocation2 + $0x151] sm:$0xff]
        %v435 = vld [vmem:[#allocation2 + $0x159] sm:$0xff]
        %v436 = vld [vmem:[#allocation2 + $0x169] sm:$0xff]
        %v437 = vld [vmem:[#allocation2 + $0x171] sm:$0xff]
        %470 = vrot.lane.b32.xlu0 %v406, 32
        %v471 = vpop.permute.xlu0 %470
        %472 = vrot.lane.b32.xlu0 %v407, 32
        %v473 = vpop.permute.xlu0 %472
        %474 = vrot.lane.b32.xlu0 %v408, 32
        %v475 = vpop.permute.xlu0 %474
        %476 = vrot.lane.b32.xlu0 %v409, 32
        %v477 = vpop.permute.xlu0 %476
        %478 = vrot.lane.b32.xlu0 %v410, 32
        %v479 = vpop.permute.xlu0 %478
        %480 = vrot.lane.b32.xlu0 %v411, 32
        %v481 = vpop.permute.xlu0 %480
        %482 = vrot.lane.b32.xlu0 %v412, 32
        %v483 = vpop.permute.xlu0 %482
        %484 = vrot.lane.b32.xlu0 %v413, 32
        %v485 = vpop.permute.xlu0 %484
        %486 = vrot.lane.b32.xlu0 %v414, 32
        %v487 = vpop.permute.xlu0 %486
        %488 = vrot.lane.b32.xlu0 %v415, 32
        %v489 = vpop.permute.xlu0 %488
        %490 = vrot.lane.b32.xlu0 %v416, 32
        %v491 = vpop.permute.xlu0 %490
        %492 = vrot.lane.b32.xlu0 %v417, 32
        %v493 = vpop.permute.xlu0 %492
        %494 = vrot.lane.b32.xlu0 %v418, 32
        %v495 = vpop.permute.xlu0 %494
        %496 = vrot.lane.b32.xlu0 %v419, 32
        %v497 = vpop.permute.xlu0 %496
        %498 = vrot.lane.b32.xlu0 %v420, 32
        %v499 = vpop.permute.xlu0 %498
        %500 = vrot.lane.b32.xlu0 %v421, 32
        %v501 = vpop.permute.xlu0 %500
        %502 = vrot.lane.b32.xlu0 %v422, 32
        %v503 = vpop.permute.xlu0 %502
        %504 = vrot.lane.b32.xlu0 %v423, 32
        %v505 = vpop.permute.xlu0 %504
        %506 = vrot.lane.b32.xlu0 %v424, 32
        %v507 = vpop.permute.xlu0 %506
        %508 = vrot.lane.b32.xlu0 %v425, 32
        %v509 = vpop.permute.xlu0 %508
        %510 = vrot.lane.b32.xlu0 %v426, 32
        %v511 = vpop.permute.xlu0 %510
        %512 = vrot.lane.b32.xlu0 %v427, 32
        %v513 = vpop.permute.xlu0 %512
        %514 = vrot.lane.b32.xlu0 %v428, 32
        %v515 = vpop.permute.xlu0 %514
        %516 = vrot.lane.b32.xlu0 %v429, 32
        %v517 = vpop.permute.xlu0 %516
        %518 = vrot.lane.b32.xlu0 %v430, 32
        %v519 = vpop.permute.xlu0 %518
        %520 = vrot.lane.b32.xlu0 %v431, 32
        %v521 = vpop.permute.xlu0 %520
        %522 = vrot.lane.b32.xlu0 %v432, 32
        %v523 = vpop.permute.xlu0 %522
        %524 = vrot.lane.b32.xlu0 %v433, 32
        %v525 = vpop.permute.xlu0 %524
        %526 = vrot.lane.b32.xlu0 %v434, 32
        %v527 = vpop.permute.xlu0 %526
        %528 = vrot.lane.b32.xlu0 %v435, 32
        %v529 = vpop.permute.xlu0 %528
        %530 = vrot.lane.b32.xlu0 %v436, 32
        %v531 = vpop.permute.xlu0 %530
        %532 = vrot.lane.b32.xlu0 %v437, 32
        %v533 = vpop.permute.xlu0 %532
        %vm566 = vcmask 523520
        %567 = vst.msk [vmem:[#allocation3] sm:$0xff] %vm566, %v471
        %568 = vst.msk [vmem:[#allocation3 + $0x18] sm:$0xff] %vm566, %v473
        %569 = vst.msk [vmem:[#allocation3 + $0x30] sm:$0xff] %vm566, %v475
        %570 = vst.msk [vmem:[#allocation3 + $0x48] sm:$0xff] %vm566, %v477
        %571 = vst.msk [vmem:[#allocation3 + $0x60] sm:$0xff] %vm566, %v479
        %572 = vst.msk [vmem:[#allocation3 + $0x78] sm:$0xff] %vm566, %v481
        %573 = vst.msk [vmem:[#allocation3 + $0x90] sm:$0xff] %vm566, %v483
        %574 = vst.msk [vmem:[#allocation3 + $0xa8] sm:$0xff] %vm566, %v485
        %575 = vst.msk [vmem:[#allocation3 + $0xc0] sm:$0xff] %vm566, %v487
        %576 = vst.msk [vmem:[#allocation3 + $0xd8] sm:$0xff] %vm566, %v489
        %577 = vst.msk [vmem:[#allocation3 + $0xf0] sm:$0xff] %vm566, %v491
        %578 = vst.msk [vmem:[#allocation3 + $0x108] sm:$0xff] %vm566, %v493
        %579 = vst.msk [vmem:[#allocation3 + $0x120] sm:$0xff] %vm566, %v495
        %580 = vst.msk [vmem:[#allocation3 + $0x138] sm:$0xff] %vm566, %v497
        %581 = vst.msk [vmem:[#allocation3 + $0x150] sm:$0xff] %vm566, %v499
        %582 = vst.msk [vmem:[#allocation3 + $0x168] sm:$0xff] %vm566, %v501
        %583 = vst.msk [vmem:[#allocation3 + $0x180] sm:$0xff] %vm566, %v503
        %584 = vst.msk [vmem:[#allocation3 + $0x198] sm:$0xff] %vm566, %v505
        %585 = vst.msk [vmem:[#allocation3 + $0x1b0] sm:$0xff] %vm566, %v507
        %586 = vst.msk [vmem:[#allocation3 + $0x1c8] sm:$0xff] %vm566, %v509
        %587 = vst.msk [vmem:[#allocation3 + $0x1e0] sm:$0xff] %vm566, %v511
        %588 = vst.msk [vmem:[#allocation3 + $0x1f8] sm:$0xff] %vm566, %v513
        %589 = vst.msk [vmem:[#allocation3 + $0x210] sm:$0xff] %vm566, %v515
        %590 = vst.msk [vmem:[#allocation3 + $0x228] sm:$0xff] %vm566, %v517
        %591 = vst.msk [vmem:[#allocation3 + $0x240] sm:$0xff] %vm566, %v519
        %592 = vst.msk [vmem:[#allocation3 + $0x258] sm:$0xff] %vm566, %v521
        %593 = vst.msk [vmem:[#allocation3 + $0x270] sm:$0xff] %vm566, %v523
        %594 = vst.msk [vmem:[#allocation3 + $0x288] sm:$0xff] %vm566, %v525
        %595 = vst.msk [vmem:[#allocation3 + $0x2a0] sm:$0xff] %vm566, %v527
        %596 = vst.msk [vmem:[#allocation3 + $0x2b8] sm:$0xff] %vm566, %v529
        %597 = vst.msk [vmem:[#allocation3 + $0x2d0] sm:$0xff] %vm566, %v531
        %598 = vst.msk [vmem:[#allocation3 + $0x2e8] sm:$0xff] %vm566, %v533
        %v599 = vld [vmem:[#allocation2 + $0x2] sm:$0xff]
        %v600 = vld [vmem:[#allocation2 + $0xa] sm:$0xff]
        %v601 = vld [vmem:[#allocation2 + $0x1a] sm:$0xff]
        %v602 = vld [vmem:[#allocation2 + $0x22] sm:$0xff]
        %v603 = vld [vmem:[#allocation2 + $0x32] sm:$0xff]
        %v604 = vld [vmem:[#allocation2 + $0x3a] sm:$0xff]
        %v605 = vld [vmem:[#allocation2 + $0x4a] sm:$0xff]
        %v606 = vld [vmem:[#allocation2 + $0x52] sm:$0xff]
        %v607 = vld [vmem:[#allocation2 + $0x62] sm:$0xff]
        %v608 = vld [vmem:[#allocation2 + $0x6a] sm:$0xff]
        %v609 = vld [vmem:[#allocation2 + $0x7a] sm:$0xff]
        %v610 = vld [vmem:[#allocation2 + $0x82] sm:$0xff]
        %v611 = vld [vmem:[#allocation2 + $0x92] sm:$0xff]
        %v612 = vld [vmem:[#allocation2 + $0x9a] sm:$0xff]
        %v613 = vld [vmem:[#allocation2 + $0xaa] sm:$0xff]
        %v614 = vld [vmem:[#allocation2 + $0xb2] sm:$0xff]
        %v615 = vld [vmem:[#allocation2 + $0xc2] sm:$0xff]
        %v616 = vld [vmem:[#allocation2 + $0xca] sm:$0xff]
        %v617 = vld [vmem:[#allocation2 + $0xda] sm:$0xff]
        %v618 = vld [vmem:[#allocation2 + $0xe2] sm:$0xff]
        %v619 = vld [vmem:[#allocation2 + $0xf2] sm:$0xff]
        %v620 = vld [vmem:[#allocation2 + $0xfa] sm:$0xff]
        %v621 = vld [vmem:[#allocation2 + $0x10a] sm:$0xff]
        %v622 = vld [vmem:[#allocation2 + $0x112] sm:$0xff]
        %v623 = vld [vmem:[#allocation2 + $0x122] sm:$0xff]
        %v624 = vld [vmem:[#allocation2 + $0x12a] sm:$0xff]
        %v625 = vld [vmem:[#allocation2 + $0x13a] sm:$0xff]
        %v626 = vld [vmem:[#allocation2 + $0x142] sm:$0xff]
        %v627 = vld [vmem:[#allocation2 + $0x152] sm:$0xff]
        %v628 = vld [vmem:[#allocation2 + $0x15a] sm:$0xff]
        %v629 = vld [vmem:[#allocation2 + $0x16a] sm:$0xff]
        %v630 = vld [vmem:[#allocation2 + $0x172] sm:$0xff]
        %663 = vrot.lane.b32.xlu0 %v599, 64
        %v664 = vpop.permute.xlu0 %663
        %665 = vrot.lane.b32.xlu0 %v600, 64
        %v666 = vpop.permute.xlu0 %665
        %667 = vrot.lane.b32.xlu0 %v601, 64
        %v668 = vpop.permute.xlu0 %667
        %669 = vrot.lane.b32.xlu0 %v602, 64
        %v670 = vpop.permute.xlu0 %669
        %671 = vrot.lane.b32.xlu0 %v603, 64
        %v672 = vpop.permute.xlu0 %671
        %673 = vrot.lane.b32.xlu0 %v604, 64
        %v674 = vpop.permute.xlu0 %673
        %675 = vrot.lane.b32.xlu0 %v605, 64
        %v676 = vpop.permute.xlu0 %675
        %677 = vrot.lane.b32.xlu0 %v606, 64
        %v678 = vpop.permute.xlu0 %677
        %679 = vrot.lane.b32.xlu0 %v607, 64
        %v680 = vpop.permute.xlu0 %679
        %681 = vrot.lane.b32.xlu0 %v608, 64
        %v682 = vpop.permute.xlu0 %681
        %683 = vrot.lane.b32.xlu0 %v609, 64
        %v684 = vpop.permute.xlu0 %683
        %685 = vrot.lane.b32.xlu0 %v610, 64
        %v686 = vpop.permute.xlu0 %685
        %687 = vrot.lane.b32.xlu0 %v611, 64
        %v688 = vpop.permute.xlu0 %687
        %689 = vrot.lane.b32.xlu0 %v612, 64
        %v690 = vpop.permute.xlu0 %689
        %691 = vrot.lane.b32.xlu0 %v613, 64
        %v692 = vpop.permute.xlu0 %691
        %693 = vrot.lane.b32.xlu0 %v614, 64
        %v694 = vpop.permute.xlu0 %693
        %695 = vrot.lane.b32.xlu0 %v615, 64
        %v696 = vpop.permute.xlu0 %695
        %697 = vrot.lane.b32.xlu0 %v616, 64
        %v698 = vpop.permute.xlu0 %697
        %699 = vrot.lane.b32.xlu0 %v617, 64
        %v700 = vpop.permute.xlu0 %699
        %701 = vrot.lane.b32.xlu0 %v618, 64
        %v702 = vpop.permute.xlu0 %701
        %703 = vrot.lane.b32.xlu0 %v619, 64
        %v704 = vpop.permute.xlu0 %703
        %705 = vrot.lane.b32.xlu0 %v620, 64
        %v706 = vpop.permute.xlu0 %705
        %707 = vrot.lane.b32.xlu0 %v621, 64
        %v708 = vpop.permute.xlu0 %707
        %709 = vrot.lane.b32.xlu0 %v622, 64
        %v710 = vpop.permute.xlu0 %709
        %711 = vrot.lane.b32.xlu0 %v623, 64
        %v712 = vpop.permute.xlu0 %711
        %713 = vrot.lane.b32.xlu0 %v624, 64
        %v714 = vpop.permute.xlu0 %713
        %715 = vrot.lane.b32.xlu0 %v625, 64
        %v716 = vpop.permute.xlu0 %715
        %717 = vrot.lane.b32.xlu0 %v626, 64
        %v718 = vpop.permute.xlu0 %717
        %719 = vrot.lane.b32.xlu0 %v627, 64
        %v720 = vpop.permute.xlu0 %719
        %721 = vrot.lane.b32.xlu0 %v628, 64
        %v722 = vpop.permute.xlu0 %721
        %723 = vrot.lane.b32.xlu0 %v629, 64
        %v724 = vpop.permute.xlu0 %723
        %725 = vrot.lane.b32.xlu0 %v630, 64
        %v726 = vpop.permute.xlu0 %725
        %vm759 = vcmask 785920
        %760 = vst.msk [vmem:[#allocation3] sm:$0xff] %vm759, %v664
        %761 = vst.msk [vmem:[#allocation3 + $0x18] sm:$0xff] %vm759, %v666
        %762 = vst.msk [vmem:[#allocation3 + $0x30] sm:$0xff] %vm759, %v668
        %763 = vst.msk [vmem:[#allocation3 + $0x48] sm:$0xff] %vm759, %v670
        %764 = vst.msk [vmem:[#allocation3 + $0x60] sm:$0xff] %vm759, %v672
        %765 = vst.msk [vmem:[#allocation3 + $0x78] sm:$0xff] %vm759, %v674
        %766 = vst.msk [vmem:[#allocation3 + $0x90] sm:$0xff] %vm759, %v676
        %767 = vst.msk [vmem:[#allocation3 + $0xa8] sm:$0xff] %vm759, %v678
        %768 = vst.msk [vmem:[#allocation3 + $0xc0] sm:$0xff] %vm759, %v680
        %769 = vst.msk [vmem:[#allocation3 + $0xd8] sm:$0xff] %vm759, %v682
        %770 = vst.msk [vmem:[#allocation3 + $0xf0] sm:$0xff] %vm759, %v684
        %771 = vst.msk [vmem:[#allocation3 + $0x108] sm:$0xff] %vm759, %v686
        %772 = vst.msk [vmem:[#allocation3 + $0x120] sm:$0xff] %vm759, %v688
        %773 = vst.msk [vmem:[#allocation3 + $0x138] sm:$0xff] %vm759, %v690
        %774 = vst.msk [vmem:[#allocation3 + $0x150] sm:$0xff] %vm759, %v692
        %775 = vst.msk [vmem:[#allocation3 + $0x168] sm:$0xff] %vm759, %v694
        %776 = vst.msk [vmem:[#allocation3 + $0x180] sm:$0xff] %vm759, %v696
        %777 = vst.msk [vmem:[#allocation3 + $0x198] sm:$0xff] %vm759, %v698
        %778 = vst.msk [vmem:[#allocation3 + $0x1b0] sm:$0xff] %vm759, %v700
        %779 = vst.msk [vmem:[#allocation3 + $0x1c8] sm:$0xff] %vm759, %v702
        %780 = vst.msk [vmem:[#allocation3 + $0x1e0] sm:$0xff] %vm759, %v704
        %781 = vst.msk [vmem:[#allocation3 + $0x1f8] sm:$0xff] %vm759, %v706
        %782 = vst.msk [vmem:[#allocation3 + $0x210] sm:$0xff] %vm759, %v708
        %783 = vst.msk [vmem:[#allocation3 + $0x228] sm:$0xff] %vm759, %v710
        %784 = vst.msk [vmem:[#allocation3 + $0x240] sm:$0xff] %vm759, %v712
        %785 = vst.msk [vmem:[#allocation3 + $0x258] sm:$0xff] %vm759, %v714
        %786 = vst.msk [vmem:[#allocation3 + $0x270] sm:$0xff] %vm759, %v716
        %787 = vst.msk [vmem:[#allocation3 + $0x288] sm:$0xff] %vm759, %v718
        %788 = vst.msk [vmem:[#allocation3 + $0x2a0] sm:$0xff] %vm759, %v720
        %789 = vst.msk [vmem:[#allocation3 + $0x2b8] sm:$0xff] %vm759, %v722
        %790 = vst.msk [vmem:[#allocation3 + $0x2d0] sm:$0xff] %vm759, %v724
        %791 = vst.msk [vmem:[#allocation3 + $0x2e8] sm:$0xff] %vm759, %v726
        %v792 = vld [vmem:[%s308] sm:$0xff]
        %v793 = vld [vmem:[%s308 + $0x8] sm:$0xff]
        %v794 = vld [vmem:[%s308 + $0x18] sm:$0xff]
        %v795 = vld [vmem:[%s308 + $0x20] sm:$0xff]
        %v796 = vld [vmem:[%s308 + $0x30] sm:$0xff]
        %v797 = vld [vmem:[%s308 + $0x38] sm:$0xff]
        %v798 = vld [vmem:[%s308 + $0x48] sm:$0xff]
        %v799 = vld [vmem:[%s308 + $0x50] sm:$0xff]
        %v800 = vld [vmem:[%s308 + $0x60] sm:$0xff]
        %v801 = vld [vmem:[%s308 + $0x68] sm:$0xff]
        %v802 = vld [vmem:[%s308 + $0x78] sm:$0xff]
        %v803 = vld [vmem:[%s308 + $0x80] sm:$0xff]
        %v804 = vld [vmem:[%s308 + $0x90] sm:$0xff]
        %v805 = vld [vmem:[%s308 + $0x98] sm:$0xff]
        %v806 = vld [vmem:[%s308 + $0xa8] sm:$0xff]
        %v807 = vld [vmem:[%s308 + $0xb0] sm:$0xff]
        %v808 = vld [vmem:[%s308 + $0xc0] sm:$0xff]
        %v809 = vld [vmem:[%s308 + $0xc8] sm:$0xff]
        %v810 = vld [vmem:[%s308 + $0xd8] sm:$0xff]
        %v811 = vld [vmem:[%s308 + $0xe0] sm:$0xff]
        %v812 = vld [vmem:[%s308 + $0xf0] sm:$0xff]
        %v813 = vld [vmem:[%s308 + $0xf8] sm:$0xff]
        %v814 = vld [vmem:[%s308 + $0x108] sm:$0xff]
        %v815 = vld [vmem:[%s308 + $0x110] sm:$0xff]
        %v816 = vld [vmem:[%s308 + $0x120] sm:$0xff]
        %v817 = vld [vmem:[%s308 + $0x128] sm:$0xff]
        %v818 = vld [vmem:[%s308 + $0x138] sm:$0xff]
        %v819 = vld [vmem:[%s308 + $0x140] sm:$0xff]
        %v820 = vld [vmem:[%s308 + $0x150] sm:$0xff]
        %v821 = vld [vmem:[%s308 + $0x158] sm:$0xff]
        %v822 = vld [vmem:[%s308 + $0x168] sm:$0xff]
        %v823 = vld [vmem:[%s308 + $0x170] sm:$0xff]
        %856 = vrot.lane.b32.xlu0 %v792, 96
        %v857 = vpop.permute.xlu0 %856
        %858 = vrot.lane.b32.xlu0 %v793, 96
        %v859 = vpop.permute.xlu0 %858
        %860 = vrot.lane.b32.xlu0 %v794, 96
        %v861 = vpop.permute.xlu0 %860
        %862 = vrot.lane.b32.xlu0 %v795, 96
        %v863 = vpop.permute.xlu0 %862
        %864 = vrot.lane.b32.xlu0 %v796, 96
        %v865 = vpop.permute.xlu0 %864
        %866 = vrot.lane.b32.xlu0 %v797, 96
        %v867 = vpop.permute.xlu0 %866
        %868 = vrot.lane.b32.xlu0 %v798, 96
        %v869 = vpop.permute.xlu0 %868
        %870 = vrot.lane.b32.xlu0 %v799, 96
        %v871 = vpop.permute.xlu0 %870
        %872 = vrot.lane.b32.xlu0 %v800, 96
        %v873 = vpop.permute.xlu0 %872
        %874 = vrot.lane.b32.xlu0 %v801, 96
        %v875 = vpop.permute.xlu0 %874
        %876 = vrot.lane.b32.xlu0 %v802, 96
        %v877 = vpop.permute.xlu0 %876
        %878 = vrot.lane.b32.xlu0 %v803, 96
        %v879 = vpop.permute.xlu0 %878
        %880 = vrot.lane.b32.xlu0 %v804, 96
        %v881 = vpop.permute.xlu0 %880
        %882 = vrot.lane.b32.xlu0 %v805, 96
        %v883 = vpop.permute.xlu0 %882
        %884 = vrot.lane.b32.xlu0 %v806, 96
        %v885 = vpop.permute.xlu0 %884
        %886 = vrot.lane.b32.xlu0 %v807, 96
        %v887 = vpop.permute.xlu0 %886
        %888 = vrot.lane.b32.xlu0 %v808, 96
        %v889 = vpop.permute.xlu0 %888
        %890 = vrot.lane.b32.xlu0 %v809, 96
        %v891 = vpop.permute.xlu0 %890
        %892 = vrot.lane.b32.xlu0 %v810, 96
        %v893 = vpop.permute.xlu0 %892
        %894 = vrot.lane.b32.xlu0 %v811, 96
        %v895 = vpop.permute.xlu0 %894
        %896 = vrot.lane.b32.xlu0 %v812, 96
        %v897 = vpop.permute.xlu0 %896
        %898 = vrot.lane.b32.xlu0 %v813, 96
        %v899 = vpop.permute.xlu0 %898
        %900 = vrot.lane.b32.xlu0 %v814, 96
        %v901 = vpop.permute.xlu0 %900
        %902 = vrot.lane.b32.xlu0 %v815, 96
        %v903 = vpop.permute.xlu0 %902
        %904 = vrot.lane.b32.xlu0 %v816, 96
        %v905 = vpop.permute.xlu0 %904
        %906 = vrot.lane.b32.xlu0 %v817, 96
        %v907 = vpop.permute.xlu0 %906
        %908 = vrot.lane.b32.xlu0 %v818, 96
        %v909 = vpop.permute.xlu0 %908
        %910 = vrot.lane.b32.xlu0 %v819, 96
        %v911 = vpop.permute.xlu0 %910
        %912 = vrot.lane.b32.xlu0 %v820, 96
        %v913 = vpop.permute.xlu0 %912
        %914 = vrot.lane.b32.xlu0 %v821, 96
        %v915 = vpop.permute.xlu0 %914
        %916 = vrot.lane.b32.xlu0 %v822, 96
        %v917 = vpop.permute.xlu0 %916
        %918 = vrot.lane.b32.xlu0 %v823, 96
        %v919 = vpop.permute.xlu0 %918
        %vm952 = vcmask 1048320
        %953 = vst.msk [vmem:[#allocation3] sm:$0xff] %vm952, %v857
        %954 = vst.msk [vmem:[#allocation3 + $0x18] sm:$0xff] %vm952, %v859
        %955 = vst.msk [vmem:[#allocation3 + $0x30] sm:$0xff] %vm952, %v861
        %956 = vst.msk [vmem:[#allocation3 + $0x48] sm:$0xff] %vm952, %v863
        %957 = vst.msk [vmem:[#allocation3 + $0x60] sm:$0xff] %vm952, %v865
        %958 = vst.msk [vmem:[#allocation3 + $0x78] sm:$0xff] %vm952, %v867
        %959 = vst.msk [vmem:[#allocation3 + $0x90] sm:$0xff] %vm952, %v869
        %960 = vst.msk [vmem:[#allocation3 + $0xa8] sm:$0xff] %vm952, %v871
        %961 = vst.msk [vmem:[#allocation3 + $0xc0] sm:$0xff] %vm952, %v873
        %962 = vst.msk [vmem:[#allocation3 + $0xd8] sm:$0xff] %vm952, %v875
        %963 = vst.msk [vmem:[#allocation3 + $0xf0] sm:$0xff] %vm952, %v877
        %964 = vst.msk [vmem:[#allocation3 + $0x108] sm:$0xff] %vm952, %v879
        %965 = vst.msk [vmem:[#allocation3 + $0x120] sm:$0xff] %vm952, %v881
        %966 = vst.msk [vmem:[#allocation3 + $0x138] sm:$0xff] %vm952, %v883
        %967 = vst.msk [vmem:[#allocation3 + $0x150] sm:$0xff] %vm952, %v885
        %968 = vst.msk [vmem:[#allocation3 + $0x168] sm:$0xff] %vm952, %v887
        %969 = vst.msk [vmem:[#allocation3 + $0x180] sm:$0xff] %vm952, %v889
        %970 = vst.msk [vmem:[#allocation3 + $0x198] sm:$0xff] %vm952, %v891
        %971 = vst.msk [vmem:[#allocation3 + $0x1b0] sm:$0xff] %vm952, %v893
        %972 = vst.msk [vmem:[#allocation3 + $0x1c8] sm:$0xff] %vm952, %v895
        %973 = vst.msk [vmem:[#allocation3 + $0x1e0] sm:$0xff] %vm952, %v897
        %974 = vst.msk [vmem:[#allocation3 + $0x1f8] sm:$0xff] %vm952, %v899
        %975 = vst.msk [vmem:[#allocation3 + $0x210] sm:$0xff] %vm952, %v901
        %976 = vst.msk [vmem:[#allocation3 + $0x228] sm:$0xff] %vm952, %v903
        %977 = vst.msk [vmem:[#allocation3 + $0x240] sm:$0xff] %vm952, %v905
        %978 = vst.msk [vmem:[#allocation3 + $0x258] sm:$0xff] %vm952, %v907
        %979 = vst.msk [vmem:[#allocation3 + $0x270] sm:$0xff] %vm952, %v909
        %980 = vst.msk [vmem:[#allocation3 + $0x288] sm:$0xff] %vm952, %v911
        %981 = vst.msk [vmem:[#allocation3 + $0x2a0] sm:$0xff] %vm952, %v913
        %982 = vst.msk [vmem:[#allocation3 + $0x2b8] sm:$0xff] %vm952, %v915
        %983 = vst.msk [vmem:[#allocation3 + $0x2d0] sm:$0xff] %vm952, %v917
        %984 = vst.msk [vmem:[#allocation3 + $0x2e8] sm:$0xff] %vm952, %v919
        %v985 = vld [vmem:[%s308 + $0x1] sm:$0xff]
        %v986 = vld [vmem:[%s308 + $0x9] sm:$0xff]
        %v987 = vld [vmem:[%s308 + $0x19] sm:$0xff]
        %v988 = vld [vmem:[%s308 + $0x21] sm:$0xff]
        %v989 = vld [vmem:[%s308 + $0x31] sm:$0xff]
        %v990 = vld [vmem:[%s308 + $0x39] sm:$0xff]
        %v991 = vld [vmem:[%s308 + $0x49] sm:$0xff]
        %v992 = vld [vmem:[%s308 + $0x51] sm:$0xff]
        %v993 = vld [vmem:[%s308 + $0x61] sm:$0xff]
        %v994 = vld [vmem:[%s308 + $0x69] sm:$0xff]
        %v995 = vld [vmem:[%s308 + $0x79] sm:$0xff]
        %v996 = vld [vmem:[%s308 + $0x81] sm:$0xff]
        %v997 = vld [vmem:[%s308 + $0x91] sm:$0xff]
        %v998 = vld [vmem:[%s308 + $0x99] sm:$0xff]
        %v999 = vld [vmem:[%s308 + $0xa9] sm:$0xff]
        %v1000 = vld [vmem:[%s308 + $0xb1] sm:$0xff]
        %v1001 = vld [vmem:[%s308 + $0xc1] sm:$0xff]
        %v1002 = vld [vmem:[%s308 + $0xc9] sm:$0xff]
        %v1003 = vld [vmem:[%s308 + $0xd9] sm:$0xff]
        %v1004 = vld [vmem:[%s308 + $0xe1] sm:$0xff]
        %v1005 = vld [vmem:[%s308 + $0xf1] sm:$0xff]
        %v1006 = vld [vmem:[%s308 + $0xf9] sm:$0xff]
        %v1007 = vld [vmem:[%s308 + $0x109] sm:$0xff]
        %v1008 = vld [vmem:[%s308 + $0x111] sm:$0xff]
        %v1009 = vld [vmem:[%s308 + $0x121] sm:$0xff]
        %v1010 = vld [vmem:[%s308 + $0x129] sm:$0xff]
        %v1011 = vld [vmem:[%s308 + $0x139] sm:$0xff]
        %v1012 = vld [vmem:[%s308 + $0x141] sm:$0xff]
        %v1013 = vld [vmem:[%s308 + $0x151] sm:$0xff]
        %v1014 = vld [vmem:[%s308 + $0x159] sm:$0xff]
        %v1015 = vld [vmem:[%s308 + $0x169] sm:$0xff]
        %v1016 = vld [vmem:[%s308 + $0x171] sm:$0xff]
        %1017 = vst.msk [vmem:[#allocation3 + $0x8] sm:$0xff] %vm309, %v985
        %1018 = vst.msk [vmem:[#allocation3 + $0x20] sm:$0xff] %vm309, %v986
        %1019 = vst.msk [vmem:[#allocation3 + $0x38] sm:$0xff] %vm309, %v987
        %1020 = vst.msk [vmem:[#allocation3 + $0x50] sm:$0xff] %vm309, %v988
        %1021 = vst.msk [vmem:[#allocation3 + $0x68] sm:$0xff] %vm309, %v989
        %1022 = vst.msk [vmem:[#allocation3 + $0x80] sm:$0xff] %vm309, %v990
        %1023 = vst.msk [vmem:[#allocation3 + $0x98] sm:$0xff] %vm309, %v991
        %1024 = vst.msk [vmem:[#allocation3 + $0xb0] sm:$0xff] %vm309, %v992
        %1025 = vst.msk [vmem:[#allocation3 + $0xc8] sm:$0xff] %vm309, %v993
        %1026 = vst.msk [vmem:[#allocation3 + $0xe0] sm:$0xff] %vm309, %v994
        %1027 = vst.msk [vmem:[#allocation3 + $0xf8] sm:$0xff] %vm309, %v995
        %1028 = vst.msk [vmem:[#allocation3 + $0x110] sm:$0xff] %vm309, %v996
        %1029 = vst.msk [vmem:[#allocation3 + $0x128] sm:$0xff] %vm309, %v997
        %1030 = vst.msk [vmem:[#allocation3 + $0x140] sm:$0xff] %vm309, %v998
        %1031 = vst.msk [vmem:[#allocation3 + $0x158] sm:$0xff] %vm309, %v999
        %1032 = vst.msk [vmem:[#allocation3 + $0x170] sm:$0xff] %vm309, %v1000
        %1033 = vst.msk [vmem:[#allocation3 + $0x188] sm:$0xff] %vm309, %v1001
        %1034 = vst.msk [vmem:[#allocation3 + $0x1a0] sm:$0xff] %vm309, %v1002
        %1035 = vst.msk [vmem:[#allocation3 + $0x1b8] sm:$0xff] %vm309, %v1003
        %1036 = vst.msk [vmem:[#allocation3 + $0x1d0] sm:$0xff] %vm309, %v1004
        %1037 = vst.msk [vmem:[#allocation3 + $0x1e8] sm:$0xff] %vm309, %v1005
        %1038 = vst.msk [vmem:[#allocation3 + $0x200] sm:$0xff] %vm309, %v1006
        %1039 = vst.msk [vmem:[#allocation3 + $0x218] sm:$0xff] %vm309, %v1007
        %1040 = vst.msk [vmem:[#allocation3 + $0x230] sm:$0xff] %vm309, %v1008
        %1041 = vst.msk [vmem:[#allocation3 + $0x248] sm:$0xff] %vm309, %v1009
        %1042 = vst.msk [vmem:[#allocation3 + $0x260] sm:$0xff] %vm309, %v1010
        %1043 = vst.msk [vmem:[#allocation3 + $0x278] sm:$0xff] %vm309, %v1011
        %1044 = vst.msk [vmem:[#allocation3 + $0x290] sm:$0xff] %vm309, %v1012
        %1045 = vst.msk [vmem:[#allocation3 + $0x2a8] sm:$0xff] %vm309, %v1013
        %1046 = vst.msk [vmem:[#allocation3 + $0x2c0] sm:$0xff] %vm309, %v1014
        %1047 = vst.msk [vmem:[#allocation3 + $0x2d8] sm:$0xff] %vm309, %v1015
        %1048 = vst.msk [vmem:[#allocation3 + $0x2f0] sm:$0xff] %vm309, %v1016
        %v1049 = vld [vmem:[%s308 + $0x2] sm:$0xff]
        %v1050 = vld [vmem:[%s308 + $0xa] sm:$0xff]
        %v1051 = vld [vmem:[%s308 + $0x1a] sm:$0xff]
        %v1052 = vld [vmem:[%s308 + $0x22] sm:$0xff]
        %v1053 = vld [vmem:[%s308 + $0x32] sm:$0xff]
        %v1054 = vld [vmem:[%s308 + $0x3a] sm:$0xff]
        %v1055 = vld [vmem:[%s308 + $0x4a] sm:$0xff]
        %v1056 = vld [vmem:[%s308 + $0x52] sm:$0xff]
        %v1057 = vld [vmem:[%s308 + $0x62] sm:$0xff]
        %v1058 = vld [vmem:[%s308 + $0x6a] sm:$0xff]
        %v1059 = vld [vmem:[%s308 + $0x7a] sm:$0xff]
        %v1060 = vld [vmem:[%s308 + $0x82] sm:$0xff]
        %v1061 = vld [vmem:[%s308 + $0x92] sm:$0xff]
        %v1062 = vld [vmem:[%s308 + $0x9a] sm:$0xff]
        %v1063 = vld [vmem:[%s308 + $0xaa] sm:$0xff]
        %v1064 = vld [vmem:[%s308 + $0xb2] sm:$0xff]
        %v1065 = vld [vmem:[%s308 + $0xc2] sm:$0xff]
        %v1066 = vld [vmem:[%s308 + $0xca] sm:$0xff]
        %v1067 = vld [vmem:[%s308 + $0xda] sm:$0xff]
        %v1068 = vld [vmem:[%s308 + $0xe2] sm:$0xff]
        %v1069 = vld [vmem:[%s308 + $0xf2] sm:$0xff]
        %v1070 = vld [vmem:[%s308 + $0xfa] sm:$0xff]
        %v1071 = vld [vmem:[%s308 + $0x10a] sm:$0xff]
        %v1072 = vld [vmem:[%s308 + $0x112] sm:$0xff]
        %v1073 = vld [vmem:[%s308 + $0x122] sm:$0xff]
        %v1074 = vld [vmem:[%s308 + $0x12a] sm:$0xff]
        %v1075 = vld [vmem:[%s308 + $0x13a] sm:$0xff]
        %v1076 = vld [vmem:[%s308 + $0x142] sm:$0xff]
        %v1077 = vld [vmem:[%s308 + $0x152] sm:$0xff]
        %v1078 = vld [vmem:[%s308 + $0x15a] sm:$0xff]
        %v1079 = vld [vmem:[%s308 + $0x16a] sm:$0xff]
        %v1080 = vld [vmem:[%s308 + $0x172] sm:$0xff]
        %1113 = vrot.lane.b32.xlu0 %v1049, 32
        %v1114 = vpop.permute.xlu0 %1113
        %1115 = vrot.lane.b32.xlu0 %v1050, 32
        %v1116 = vpop.permute.xlu0 %1115
        %1117 = vrot.lane.b32.xlu0 %v1051, 32
        %v1118 = vpop.permute.xlu0 %1117
        %1119 = vrot.lane.b32.xlu0 %v1052, 32
        %v1120 = vpop.permute.xlu0 %1119
        %1121 = vrot.lane.b32.xlu0 %v1053, 32
        %v1122 = vpop.permute.xlu0 %1121
        %1123 = vrot.lane.b32.xlu0 %v1054, 32
        %v1124 = vpop.permute.xlu0 %1123
        %1125 = vrot.lane.b32.xlu0 %v1055, 32
        %v1126 = vpop.permute.xlu0 %1125
        %1127 = vrot.lane.b32.xlu0 %v1056, 32
        %v1128 = vpop.permute.xlu0 %1127
        %1129 = vrot.lane.b32.xlu0 %v1057, 32
        %v1130 = vpop.permute.xlu0 %1129
        %1131 = vrot.lane.b32.xlu0 %v1058, 32
        %v1132 = vpop.permute.xlu0 %1131
        %1133 = vrot.lane.b32.xlu0 %v1059, 32
        %v1134 = vpop.permute.xlu0 %1133
        %1135 = vrot.lane.b32.xlu0 %v1060, 32
        %v1136 = vpop.permute.xlu0 %1135
        %1137 = vrot.lane.b32.xlu0 %v1061, 32
        %v1138 = vpop.permute.xlu0 %1137
        %1139 = vrot.lane.b32.xlu0 %v1062, 32
        %v1140 = vpop.permute.xlu0 %1139
        %1141 = vrot.lane.b32.xlu0 %v1063, 32
        %v1142 = vpop.permute.xlu0 %1141
        %1143 = vrot.lane.b32.xlu0 %v1064, 32
        %v1144 = vpop.permute.xlu0 %1143
        %1145 = vrot.lane.b32.xlu0 %v1065, 32
        %v1146 = vpop.permute.xlu0 %1145
        %1147 = vrot.lane.b32.xlu0 %v1066, 32
        %v1148 = vpop.permute.xlu0 %1147
        %1149 = vrot.lane.b32.xlu0 %v1067, 32
        %v1150 = vpop.permute.xlu0 %1149
        %1151 = vrot.lane.b32.xlu0 %v1068, 32
        %v1152 = vpop.permute.xlu0 %1151
        %1153 = vrot.lane.b32.xlu0 %v1069, 32
        %v1154 = vpop.permute.xlu0 %1153
        %1155 = vrot.lane.b32.xlu0 %v1070, 32
        %v1156 = vpop.permute.xlu0 %1155
        %1157 = vrot.lane.b32.xlu0 %v1071, 32
        %v1158 = vpop.permute.xlu0 %1157
        %1159 = vrot.lane.b32.xlu0 %v1072, 32
        %v1160 = vpop.permute.xlu0 %1159
        %1161 = vrot.lane.b32.xlu0 %v1073, 32
        %v1162 = vpop.permute.xlu0 %1161
        %1163 = vrot.lane.b32.xlu0 %v1074, 32
        %v1164 = vpop.permute.xlu0 %1163
        %1165 = vrot.lane.b32.xlu0 %v1075, 32
        %v1166 = vpop.permute.xlu0 %1165
        %1167 = vrot.lane.b32.xlu0 %v1076, 32
        %v1168 = vpop.permute.xlu0 %1167
        %1169 = vrot.lane.b32.xlu0 %v1077, 32
        %v1170 = vpop.permute.xlu0 %1169
        %1171 = vrot.lane.b32.xlu0 %v1078, 32
        %v1172 = vpop.permute.xlu0 %1171
        %1173 = vrot.lane.b32.xlu0 %v1079, 32
        %v1174 = vpop.permute.xlu0 %1173
        %1175 = vrot.lane.b32.xlu0 %v1080, 32
        %v1176 = vpop.permute.xlu0 %1175
        %1209 = vst.msk [vmem:[#allocation3 + $0x8] sm:$0xff] %vm566, %v1114
        %1210 = vst.msk [vmem:[#allocation3 + $0x20] sm:$0xff] %vm566, %v1116
        %1211 = vst.msk [vmem:[#allocation3 + $0x38] sm:$0xff] %vm566, %v1118
        %1212 = vst.msk [vmem:[#allocation3 + $0x50] sm:$0xff] %vm566, %v1120
        %1213 = vst.msk [vmem:[#allocation3 + $0x68] sm:$0xff] %vm566, %v1122
        %1214 = vst.msk [vmem:[#allocation3 + $0x80] sm:$0xff] %vm566, %v1124
        %1215 = vst.msk [vmem:[#allocation3 + $0x98] sm:$0xff] %vm566, %v1126
        %1216 = vst.msk [vmem:[#allocation3 + $0xb0] sm:$0xff] %vm566, %v1128
        %1217 = vst.msk [vmem:[#allocation3 + $0xc8] sm:$0xff] %vm566, %v1130
        %1218 = vst.msk [vmem:[#allocation3 + $0xe0] sm:$0xff] %vm566, %v1132
        %1219 = vst.msk [vmem:[#allocation3 + $0xf8] sm:$0xff] %vm566, %v1134
        %1220 = vst.msk [vmem:[#allocation3 + $0x110] sm:$0xff] %vm566, %v1136
        %1221 = vst.msk [vmem:[#allocation3 + $0x128] sm:$0xff] %vm566, %v1138
        %1222 = vst.msk [vmem:[#allocation3 + $0x140] sm:$0xff] %vm566, %v1140
        %1223 = vst.msk [vmem:[#allocation3 + $0x158] sm:$0xff] %vm566, %v1142
        %1224 = vst.msk [vmem:[#allocation3 + $0x170] sm:$0xff] %vm566, %v1144
        %1225 = vst.msk [vmem:[#allocation3 + $0x188] sm:$0xff] %vm566, %v1146
        %1226 = vst.msk [vmem:[#allocation3 + $0x1a0] sm:$0xff] %vm566, %v1148
        %1227 = vst.msk [vmem:[#allocation3 + $0x1b8] sm:$0xff] %vm566, %v1150
        %1228 = vst.msk [vmem:[#allocation3 + $0x1d0] sm:$0xff] %vm566, %v1152
        %1229 = vst.msk [vmem:[#allocation3 + $0x1e8] sm:$0xff] %vm566, %v1154
        %1230 = vst.msk [vmem:[#allocation3 + $0x200] sm:$0xff] %vm566, %v1156
        %1231 = vst.msk [vmem:[#allocation3 + $0x218] sm:$0xff] %vm566, %v1158
        %1232 = vst.msk [vmem:[#allocation3 + $0x230] sm:$0xff] %vm566, %v1160
        %1233 = vst.msk [vmem:[#allocation3 + $0x248] sm:$0xff] %vm566, %v1162
        %1234 = vst.msk [vmem:[#allocation3 + $0x260] sm:$0xff] %vm566, %v1164
        %1235 = vst.msk [vmem:[#allocation3 + $0x278] sm:$0xff] %vm566, %v1166
        %1236 = vst.msk [vmem:[#allocation3 + $0x290] sm:$0xff] %vm566, %v1168
        %1237 = vst.msk [vmem:[#allocation3 + $0x2a8] sm:$0xff] %vm566, %v1170
        %1238 = vst.msk [vmem:[#allocation3 + $0x2c0] sm:$0xff] %vm566, %v1172
        %1239 = vst.msk [vmem:[#allocation3 + $0x2d8] sm:$0xff] %vm566, %v1174
        %1240 = vst.msk [vmem:[#allocation3 + $0x2f0] sm:$0xff] %vm566, %v1176
        %s1241 = scalar_lea.vmem [#allocation2], 48
        %v1242 = vld [vmem:[%s1241] sm:$0xff]
        %v1243 = vld [vmem:[%s1241 + $0x8] sm:$0xff]
        %v1244 = vld [vmem:[%s1241 + $0x18] sm:$0xff]
        %v1245 = vld [vmem:[%s1241 + $0x20] sm:$0xff]
        %v1246 = vld [vmem:[%s1241 + $0x30] sm:$0xff]
        %v1247 = vld [vmem:[%s1241 + $0x38] sm:$0xff]
        %v1248 = vld [vmem:[%s1241 + $0x48] sm:$0xff]
        %v1249 = vld [vmem:[%s1241 + $0x50] sm:$0xff]
        %v1250 = vld [vmem:[%s1241 + $0x60] sm:$0xff]
        %v1251 = vld [vmem:[%s1241 + $0x68] sm:$0xff]
        %v1252 = vld [vmem:[%s1241 + $0x78] sm:$0xff]
        %v1253 = vld [vmem:[%s1241 + $0x80] sm:$0xff]
        %v1254 = vld [vmem:[%s1241 + $0x90] sm:$0xff]
        %v1255 = vld [vmem:[%s1241 + $0x98] sm:$0xff]
        %v1256 = vld [vmem:[%s1241 + $0xa8] sm:$0xff]
        %v1257 = vld [vmem:[%s1241 + $0xb0] sm:$0xff]
        %v1258 = vld [vmem:[%s1241 + $0xc0] sm:$0xff]
        %v1259 = vld [vmem:[%s1241 + $0xc8] sm:$0xff]
        %v1260 = vld [vmem:[%s1241 + $0xd8] sm:$0xff]
        %v1261 = vld [vmem:[%s1241 + $0xe0] sm:$0xff]
        %v1262 = vld [vmem:[%s1241 + $0xf0] sm:$0xff]
        %v1263 = vld [vmem:[%s1241 + $0xf8] sm:$0xff]
        %v1264 = vld [vmem:[%s1241 + $0x108] sm:$0xff]
        %v1265 = vld [vmem:[%s1241 + $0x110] sm:$0xff]
        %v1266 = vld [vmem:[%s1241 + $0x120] sm:$0xff]
        %v1267 = vld [vmem:[%s1241 + $0x128] sm:$0xff]
        %v1268 = vld [vmem:[%s1241 + $0x138] sm:$0xff]
        %v1269 = vld [vmem:[%s1241 + $0x140] sm:$0xff]
        %v1270 = vld [vmem:[%s1241 + $0x150] sm:$0xff]
        %v1271 = vld [vmem:[%s1241 + $0x158] sm:$0xff]
        %v1272 = vld [vmem:[%s1241 + $0x168] sm:$0xff]
        %v1273 = vld [vmem:[%s1241 + $0x170] sm:$0xff]
        %1306 = vrot.lane.b32.xlu0 %v1242, 64
        %v1307 = vpop.permute.xlu0 %1306
        %1308 = vrot.lane.b32.xlu0 %v1243, 64
        %v1309 = vpop.permute.xlu0 %1308
        %1310 = vrot.lane.b32.xlu0 %v1244, 64
        %v1311 = vpop.permute.xlu0 %1310
        %1312 = vrot.lane.b32.xlu0 %v1245, 64
        %v1313 = vpop.permute.xlu0 %1312
        %1314 = vrot.lane.b32.xlu0 %v1246, 64
        %v1315 = vpop.permute.xlu0 %1314
        %1316 = vrot.lane.b32.xlu0 %v1247, 64
        %v1317 = vpop.permute.xlu0 %1316
        %1318 = vrot.lane.b32.xlu0 %v1248, 64
        %v1319 = vpop.permute.xlu0 %1318
        %1320 = vrot.lane.b32.xlu0 %v1249, 64
        %v1321 = vpop.permute.xlu0 %1320
        %1322 = vrot.lane.b32.xlu0 %v1250, 64
        %v1323 = vpop.permute.xlu0 %1322
        %1324 = vrot.lane.b32.xlu0 %v1251, 64
        %v1325 = vpop.permute.xlu0 %1324
        %1326 = vrot.lane.b32.xlu0 %v1252, 64
        %v1327 = vpop.permute.xlu0 %1326
        %1328 = vrot.lane.b32.xlu0 %v1253, 64
        %v1329 = vpop.permute.xlu0 %1328
        %1330 = vrot.lane.b32.xlu0 %v1254, 64
        %v1331 = vpop.permute.xlu0 %1330
        %1332 = vrot.lane.b32.xlu0 %v1255, 64
        %v1333 = vpop.permute.xlu0 %1332
        %1334 = vrot.lane.b32.xlu0 %v1256, 64
        %v1335 = vpop.permute.xlu0 %1334
        %1336 = vrot.lane.b32.xlu0 %v1257, 64
        %v1337 = vpop.permute.xlu0 %1336
        %1338 = vrot.lane.b32.xlu0 %v1258, 64
        %v1339 = vpop.permute.xlu0 %1338
        %1340 = vrot.lane.b32.xlu0 %v1259, 64
        %v1341 = vpop.permute.xlu0 %1340
        %1342 = vrot.lane.b32.xlu0 %v1260, 64
        %v1343 = vpop.permute.xlu0 %1342
        %1344 = vrot.lane.b32.xlu0 %v1261, 64
        %v1345 = vpop.permute.xlu0 %1344
        %1346 = vrot.lane.b32.xlu0 %v1262, 64
        %v1347 = vpop.permute.xlu0 %1346
        %1348 = vrot.lane.b32.xlu0 %v1263, 64
        %v1349 = vpop.permute.xlu0 %1348
        %1350 = vrot.lane.b32.xlu0 %v1264, 64
        %v1351 = vpop.permute.xlu0 %1350
        %1352 = vrot.lane.b32.xlu0 %v1265, 64
        %v1353 = vpop.permute.xlu0 %1352
        %1354 = vrot.lane.b32.xlu0 %v1266, 64
        %v1355 = vpop.permute.xlu0 %1354
        %1356 = vrot.lane.b32.xlu0 %v1267, 64
        %v1357 = vpop.permute.xlu0 %1356
        %1358 = vrot.lane.b32.xlu0 %v1268, 64
        %v1359 = vpop.permute.xlu0 %1358
        %1360 = vrot.lane.b32.xlu0 %v1269, 64
        %v1361 = vpop.permute.xlu0 %1360
        %1362 = vrot.lane.b32.xlu0 %v1270, 64
        %v1363 = vpop.permute.xlu0 %1362
        %1364 = vrot.lane.b32.xlu0 %v1271, 64
        %v1365 = vpop.permute.xlu0 %1364
        %1366 = vrot.lane.b32.xlu0 %v1272, 64
        %v1367 = vpop.permute.xlu0 %1366
        %1368 = vrot.lane.b32.xlu0 %v1273, 64
        %v1369 = vpop.permute.xlu0 %1368
        %1402 = vst.msk [vmem:[#allocation3 + $0x8] sm:$0xff] %vm759, %v1307
        %1403 = vst.msk [vmem:[#allocation3 + $0x20] sm:$0xff] %vm759, %v1309
        %1404 = vst.msk [vmem:[#allocation3 + $0x38] sm:$0xff] %vm759, %v1311
        %1405 = vst.msk [vmem:[#allocation3 + $0x50] sm:$0xff] %vm759, %v1313
        %1406 = vst.msk [vmem:[#allocation3 + $0x68] sm:$0xff] %vm759, %v1315
        %1407 = vst.msk [vmem:[#allocation3 + $0x80] sm:$0xff] %vm759, %v1317
        %1408 = vst.msk [vmem:[#allocation3 + $0x98] sm:$0xff] %vm759, %v1319
        %1409 = vst.msk [vmem:[#allocation3 + $0xb0] sm:$0xff] %vm759, %v1321
        %1410 = vst.msk [vmem:[#allocation3 + $0xc8] sm:$0xff] %vm759, %v1323
        %1411 = vst.msk [vmem:[#allocation3 + $0xe0] sm:$0xff] %vm759, %v1325
        %1412 = vst.msk [vmem:[#allocation3 + $0xf8] sm:$0xff] %vm759, %v1327
        %1413 = vst.msk [vmem:[#allocation3 + $0x110] sm:$0xff] %vm759, %v1329
        %1414 = vst.msk [vmem:[#allocation3 + $0x128] sm:$0xff] %vm759, %v1331
        %1415 = vst.msk [vmem:[#allocation3 + $0x140] sm:$0xff] %vm759, %v1333
        %1416 = vst.msk [vmem:[#allocation3 + $0x158] sm:$0xff] %vm759, %v1335
        %1417 = vst.msk [vmem:[#allocation3 + $0x170] sm:$0xff] %vm759, %v1337
        %1418 = vst.msk [vmem:[#allocation3 + $0x188] sm:$0xff] %vm759, %v1339
        %1419 = vst.msk [vmem:[#allocation3 + $0x1a0] sm:$0xff] %vm759, %v1341
        %1420 = vst.msk [vmem:[#allocation3 + $0x1b8] sm:$0xff] %vm759, %v1343
        %1421 = vst.msk [vmem:[#allocation3 + $0x1d0] sm:$0xff] %vm759, %v1345
        %1422 = vst.msk [vmem:[#allocation3 + $0x1e8] sm:$0xff] %vm759, %v1347
        %1423 = vst.msk [vmem:[#allocation3 + $0x200] sm:$0xff] %vm759, %v1349
        %1424 = vst.msk [vmem:[#allocation3 + $0x218] sm:$0xff] %vm759, %v1351
        %1425 = vst.msk [vmem:[#allocation3 + $0x230] sm:$0xff] %vm759, %v1353
        %1426 = vst.msk [vmem:[#allocation3 + $0x248] sm:$0xff] %vm759, %v1355
        %1427 = vst.msk [vmem:[#allocation3 + $0x260] sm:$0xff] %vm759, %v1357
        %1428 = vst.msk [vmem:[#allocation3 + $0x278] sm:$0xff] %vm759, %v1359
        %1429 = vst.msk [vmem:[#allocation3 + $0x290] sm:$0xff] %vm759, %v1361
        %1430 = vst.msk [vmem:[#allocation3 + $0x2a8] sm:$0xff] %vm759, %v1363
        %1431 = vst.msk [vmem:[#allocation3 + $0x2c0] sm:$0xff] %vm759, %v1365
        %1432 = vst.msk [vmem:[#allocation3 + $0x2d8] sm:$0xff] %vm759, %v1367
        %1433 = vst.msk [vmem:[#allocation3 + $0x2f0] sm:$0xff] %vm759, %v1369
        %v1434 = vld [vmem:[%s1241 + $0x1] sm:$0xff]
        %v1435 = vld [vmem:[%s1241 + $0x9] sm:$0xff]
        %v1436 = vld [vmem:[%s1241 + $0x19] sm:$0xff]
        %v1437 = vld [vmem:[%s1241 + $0x21] sm:$0xff]
        %v1438 = vld [vmem:[%s1241 + $0x31] sm:$0xff]
        %v1439 = vld [vmem:[%s1241 + $0x39] sm:$0xff]
        %v1440 = vld [vmem:[%s1241 + $0x49] sm:$0xff]
        %v1441 = vld [vmem:[%s1241 + $0x51] sm:$0xff]
        %v1442 = vld [vmem:[%s1241 + $0x61] sm:$0xff]
        %v1443 = vld [vmem:[%s1241 + $0x69] sm:$0xff]
        %v1444 = vld [vmem:[%s1241 + $0x79] sm:$0xff]
        %v1445 = vld [vmem:[%s1241 + $0x81] sm:$0xff]
        %v1446 = vld [vmem:[%s1241 + $0x91] sm:$0xff]
        %v1447 = vld [vmem:[%s1241 + $0x99] sm:$0xff]
        %v1448 = vld [vmem:[%s1241 + $0xa9] sm:$0xff]
        %v1449 = vld [vmem:[%s1241 + $0xb1] sm:$0xff]
        %v1450 = vld [vmem:[%s1241 + $0xc1] sm:$0xff]
        %v1451 = vld [vmem:[%s1241 + $0xc9] sm:$0xff]
        %v1452 = vld [vmem:[%s1241 + $0xd9] sm:$0xff]
        %v1453 = vld [vmem:[%s1241 + $0xe1] sm:$0xff]
        %v1454 = vld [vmem:[%s1241 + $0xf1] sm:$0xff]
        %v1455 = vld [vmem:[%s1241 + $0xf9] sm:$0xff]
        %v1456 = vld [vmem:[%s1241 + $0x109] sm:$0xff]
        %v1457 = vld [vmem:[%s1241 + $0x111] sm:$0xff]
        %v1458 = vld [vmem:[%s1241 + $0x121] sm:$0xff]
        %v1459 = vld [vmem:[%s1241 + $0x129] sm:$0xff]
        %v1460 = vld [vmem:[%s1241 + $0x139] sm:$0xff]
        %v1461 = vld [vmem:[%s1241 + $0x141] sm:$0xff]
        %v1462 = vld [vmem:[%s1241 + $0x151] sm:$0xff]
        %v1463 = vld [vmem:[%s1241 + $0x159] sm:$0xff]
        %v1464 = vld [vmem:[%s1241 + $0x169] sm:$0xff]
        %v1465 = vld [vmem:[%s1241 + $0x171] sm:$0xff]
        %1498 = vrot.lane.b32.xlu0 %v1434, 96
        %v1499 = vpop.permute.xlu0 %1498
        %1500 = vrot.lane.b32.xlu0 %v1435, 96
        %v1501 = vpop.permute.xlu0 %1500
        %1502 = vrot.lane.b32.xlu0 %v1436, 96
        %v1503 = vpop.permute.xlu0 %1502
        %1504 = vrot.lane.b32.xlu0 %v1437, 96
        %v1505 = vpop.permute.xlu0 %1504
        %1506 = vrot.lane.b32.xlu0 %v1438, 96
        %v1507 = vpop.permute.xlu0 %1506
        %1508 = vrot.lane.b32.xlu0 %v1439, 96
        %v1509 = vpop.permute.xlu0 %1508
        %1510 = vrot.lane.b32.xlu0 %v1440, 96
        %v1511 = vpop.permute.xlu0 %1510
        %1512 = vrot.lane.b32.xlu0 %v1441, 96
        %v1513 = vpop.permute.xlu0 %1512
        %1514 = vrot.lane.b32.xlu0 %v1442, 96
        %v1515 = vpop.permute.xlu0 %1514
        %1516 = vrot.lane.b32.xlu0 %v1443, 96
        %v1517 = vpop.permute.xlu0 %1516
        %1518 = vrot.lane.b32.xlu0 %v1444, 96
        %v1519 = vpop.permute.xlu0 %1518
        %1520 = vrot.lane.b32.xlu0 %v1445, 96
        %v1521 = vpop.permute.xlu0 %1520
        %1522 = vrot.lane.b32.xlu0 %v1446, 96
        %v1523 = vpop.permute.xlu0 %1522
        %1524 = vrot.lane.b32.xlu0 %v1447, 96
        %v1525 = vpop.permute.xlu0 %1524
        %1526 = vrot.lane.b32.xlu0 %v1448, 96
        %v1527 = vpop.permute.xlu0 %1526
        %1528 = vrot.lane.b32.xlu0 %v1449, 96
        %v1529 = vpop.permute.xlu0 %1528
        %1530 = vrot.lane.b32.xlu0 %v1450, 96
        %v1531 = vpop.permute.xlu0 %1530
        %1532 = vrot.lane.b32.xlu0 %v1451, 96
        %v1533 = vpop.permute.xlu0 %1532
        %1534 = vrot.lane.b32.xlu0 %v1452, 96
        %v1535 = vpop.permute.xlu0 %1534
        %1536 = vrot.lane.b32.xlu0 %v1453, 96
        %v1537 = vpop.permute.xlu0 %1536
        %1538 = vrot.lane.b32.xlu0 %v1454, 96
        %v1539 = vpop.permute.xlu0 %1538
        %1540 = vrot.lane.b32.xlu0 %v1455, 96
        %v1541 = vpop.permute.xlu0 %1540
        %1542 = vrot.lane.b32.xlu0 %v1456, 96
        %v1543 = vpop.permute.xlu0 %1542
        %1544 = vrot.lane.b32.xlu0 %v1457, 96
        %v1545 = vpop.permute.xlu0 %1544
        %1546 = vrot.lane.b32.xlu0 %v1458, 96
        %v1547 = vpop.permute.xlu0 %1546
        %1548 = vrot.lane.b32.xlu0 %v1459, 96
        %v1549 = vpop.permute.xlu0 %1548
        %1550 = vrot.lane.b32.xlu0 %v1460, 96
        %v1551 = vpop.permute.xlu0 %1550
        %1552 = vrot.lane.b32.xlu0 %v1461, 96
        %v1553 = vpop.permute.xlu0 %1552
        %1554 = vrot.lane.b32.xlu0 %v1462, 96
        %v1555 = vpop.permute.xlu0 %1554
        %1556 = vrot.lane.b32.xlu0 %v1463, 96
        %v1557 = vpop.permute.xlu0 %1556
        %1558 = vrot.lane.b32.xlu0 %v1464, 96
        %v1559 = vpop.permute.xlu0 %1558
        %1560 = vrot.lane.b32.xlu0 %v1465, 96
        %v1561 = vpop.permute.xlu0 %1560
        %1594 = vst.msk [vmem:[#allocation3 + $0x8] sm:$0xff] %vm952, %v1499
        %1595 = vst.msk [vmem:[#allocation3 + $0x20] sm:$0xff] %vm952, %v1501
        %1596 = vst.msk [vmem:[#allocation3 + $0x38] sm:$0xff] %vm952, %v1503
        %1597 = vst.msk [vmem:[#allocation3 + $0x50] sm:$0xff] %vm952, %v1505
        %1598 = vst.msk [vmem:[#allocation3 + $0x68] sm:$0xff] %vm952, %v1507
        %1599 = vst.msk [vmem:[#allocation3 + $0x80] sm:$0xff] %vm952, %v1509
        %1600 = vst.msk [vmem:[#allocation3 + $0x98] sm:$0xff] %vm952, %v1511
        %1601 = vst.msk [vmem:[#allocation3 + $0xb0] sm:$0xff] %vm952, %v1513
        %1602 = vst.msk [vmem:[#allocation3 + $0xc8] sm:$0xff] %vm952, %v1515
        %1603 = vst.msk [vmem:[#allocation3 + $0xe0] sm:$0xff] %vm952, %v1517
        %1604 = vst.msk [vmem:[#allocation3 + $0xf8] sm:$0xff] %vm952, %v1519
        %1605 = vst.msk [vmem:[#allocation3 + $0x110] sm:$0xff] %vm952, %v1521
        %1606 = vst.msk [vmem:[#allocation3 + $0x128] sm:$0xff] %vm952, %v1523
        %1607 = vst.msk [vmem:[#allocation3 + $0x140] sm:$0xff] %vm952, %v1525
        %1608 = vst.msk [vmem:[#allocation3 + $0x158] sm:$0xff] %vm952, %v1527
        %1609 = vst.msk [vmem:[#allocation3 + $0x170] sm:$0xff] %vm952, %v1529
        %1610 = vst.msk [vmem:[#allocation3 + $0x188] sm:$0xff] %vm952, %v1531
        %1611 = vst.msk [vmem:[#allocation3 + $0x1a0] sm:$0xff] %vm952, %v1533
        %1612 = vst.msk [vmem:[#allocation3 + $0x1b8] sm:$0xff] %vm952, %v1535
        %1613 = vst.msk [vmem:[#allocation3 + $0x1d0] sm:$0xff] %vm952, %v1537
        %1614 = vst.msk [vmem:[#allocation3 + $0x1e8] sm:$0xff] %vm952, %v1539
        %1615 = vst.msk [vmem:[#allocation3 + $0x200] sm:$0xff] %vm952, %v1541
        %1616 = vst.msk [vmem:[#allocation3 + $0x218] sm:$0xff] %vm952, %v1543
        %1617 = vst.msk [vmem:[#allocation3 + $0x230] sm:$0xff] %vm952, %v1545
        %1618 = vst.msk [vmem:[#allocation3 + $0x248] sm:$0xff] %vm952, %v1547
        %1619 = vst.msk [vmem:[#allocation3 + $0x260] sm:$0xff] %vm952, %v1549
        %1620 = vst.msk [vmem:[#allocation3 + $0x278] sm:$0xff] %vm952, %v1551
        %1621 = vst.msk [vmem:[#allocation3 + $0x290] sm:$0xff] %vm952, %v1553
        %1622 = vst.msk [vmem:[#allocation3 + $0x2a8] sm:$0xff] %vm952, %v1555
        %1623 = vst.msk [vmem:[#allocation3 + $0x2c0] sm:$0xff] %vm952, %v1557
        %1624 = vst.msk [vmem:[#allocation3 + $0x2d8] sm:$0xff] %vm952, %v1559
        %1625 = vst.msk [vmem:[#allocation3 + $0x2f0] sm:$0xff] %vm952, %v1561
        %v1626 = vld [vmem:[%s1241 + $0x2] sm:$0xff]
        %v1627 = vld [vmem:[%s1241 + $0xa] sm:$0xff]
        %v1628 = vld [vmem:[%s1241 + $0x1a] sm:$0xff]
        %v1629 = vld [vmem:[%s1241 + $0x22] sm:$0xff]
        %v1630 = vld [vmem:[%s1241 + $0x32] sm:$0xff]
        %v1631 = vld [vmem:[%s1241 + $0x3a] sm:$0xff]
        %v1632 = vld [vmem:[%s1241 + $0x4a] sm:$0xff]
        %v1633 = vld [vmem:[%s1241 + $0x52] sm:$0xff]
        %v1634 = vld [vmem:[%s1241 + $0x62] sm:$0xff]
        %v1635 = vld [vmem:[%s1241 + $0x6a] sm:$0xff]
        %v1636 = vld [vmem:[%s1241 + $0x7a] sm:$0xff]
        %v1637 = vld [vmem:[%s1241 + $0x82] sm:$0xff]
        %v1638 = vld [vmem:[%s1241 + $0x92] sm:$0xff]
        %v1639 = vld [vmem:[%s1241 + $0x9a] sm:$0xff]
        %v1640 = vld [vmem:[%s1241 + $0xaa] sm:$0xff]
        %v1641 = vld [vmem:[%s1241 + $0xb2] sm:$0xff]
        %v1642 = vld [vmem:[%s1241 + $0xc2] sm:$0xff]
        %v1643 = vld [vmem:[%s1241 + $0xca] sm:$0xff]
        %v1644 = vld [vmem:[%s1241 + $0xda] sm:$0xff]
        %v1645 = vld [vmem:[%s1241 + $0xe2] sm:$0xff]
        %v1646 = vld [vmem:[%s1241 + $0xf2] sm:$0xff]
        %v1647 = vld [vmem:[%s1241 + $0xfa] sm:$0xff]
        %v1648 = vld [vmem:[%s1241 + $0x10a] sm:$0xff]
        %v1649 = vld [vmem:[%s1241 + $0x112] sm:$0xff]
        %v1650 = vld [vmem:[%s1241 + $0x122] sm:$0xff]
        %v1651 = vld [vmem:[%s1241 + $0x12a] sm:$0xff]
        %v1652 = vld [vmem:[%s1241 + $0x13a] sm:$0xff]
        %v1653 = vld [vmem:[%s1241 + $0x142] sm:$0xff]
        %v1654 = vld [vmem:[%s1241 + $0x152] sm:$0xff]
        %v1655 = vld [vmem:[%s1241 + $0x15a] sm:$0xff]
        %v1656 = vld [vmem:[%s1241 + $0x16a] sm:$0xff]
        %v1657 = vld [vmem:[%s1241 + $0x172] sm:$0xff]
        %1658 = vst.msk [vmem:[#allocation3 + $0x10] sm:$0xff] %vm309, %v1626
        %1659 = vst.msk [vmem:[#allocation3 + $0x28] sm:$0xff] %vm309, %v1627
        %1660 = vst.msk [vmem:[#allocation3 + $0x40] sm:$0xff] %vm309, %v1628
        %1661 = vst.msk [vmem:[#allocation3 + $0x58] sm:$0xff] %vm309, %v1629
        %1662 = vst.msk [vmem:[#allocation3 + $0x70] sm:$0xff] %vm309, %v1630
        %1663 = vst.msk [vmem:[#allocation3 + $0x88] sm:$0xff] %vm309, %v1631
        %1664 = vst.msk [vmem:[#allocation3 + $0xa0] sm:$0xff] %vm309, %v1632
        %1665 = vst.msk [vmem:[#allocation3 + $0xb8] sm:$0xff] %vm309, %v1633
        %1666 = vst.msk [vmem:[#allocation3 + $0xd0] sm:$0xff] %vm309, %v1634
        %1667 = vst.msk [vmem:[#allocation3 + $0xe8] sm:$0xff] %vm309, %v1635
        %1668 = vst.msk [vmem:[#allocation3 + $0x100] sm:$0xff] %vm309, %v1636
        %1669 = vst.msk [vmem:[#allocation3 + $0x118] sm:$0xff] %vm309, %v1637
        %1670 = vst.msk [vmem:[#allocation3 + $0x130] sm:$0xff] %vm309, %v1638
        %1671 = vst.msk [vmem:[#allocation3 + $0x148] sm:$0xff] %vm309, %v1639
        %1672 = vst.msk [vmem:[#allocation3 + $0x160] sm:$0xff] %vm309, %v1640
        %1673 = vst.msk [vmem:[#allocation3 + $0x178] sm:$0xff] %vm309, %v1641
        %1674 = vst.msk [vmem:[#allocation3 + $0x190] sm:$0xff] %vm309, %v1642
        %1675 = vst.msk [vmem:[#allocation3 + $0x1a8] sm:$0xff] %vm309, %v1643
        %1676 = vst.msk [vmem:[#allocation3 + $0x1c0] sm:$0xff] %vm309, %v1644
        %1677 = vst.msk [vmem:[#allocation3 + $0x1d8] sm:$0xff] %vm309, %v1645
        %1678 = vst.msk [vmem:[#allocation3 + $0x1f0] sm:$0xff] %vm309, %v1646
        %1679 = vst.msk [vmem:[#allocation3 + $0x208] sm:$0xff] %vm309, %v1647
        %1680 = vst.msk [vmem:[#allocation3 + $0x220] sm:$0xff] %vm309, %v1648
        %1681 = vst.msk [vmem:[#allocation3 + $0x238] sm:$0xff] %vm309, %v1649
        %1682 = vst.msk [vmem:[#allocation3 + $0x250] sm:$0xff] %vm309, %v1650
        %1683 = vst.msk [vmem:[#allocation3 + $0x268] sm:$0xff] %vm309, %v1651
        %1684 = vst.msk [vmem:[#allocation3 + $0x280] sm:$0xff] %vm309, %v1652
        %1685 = vst.msk [vmem:[#allocation3 + $0x298] sm:$0xff] %vm309, %v1653
        %1686 = vst.msk [vmem:[#allocation3 + $0x2b0] sm:$0xff] %vm309, %v1654
        %1687 = vst.msk [vmem:[#allocation3 + $0x2c8] sm:$0xff] %vm309, %v1655
        %1688 = vst.msk [vmem:[#allocation3 + $0x2e0] sm:$0xff] %vm309, %v1656
        %1689 = vst.msk [vmem:[#allocation3 + $0x2f8] sm:$0xff] %vm309, %v1657
        %v1690 = vld [vmem:[#allocation3] sm:$0xff]
        %v1691 = vld [vmem:[#allocation3 + $0x8] sm:$0xff]
        %v1692 = vld [vmem:[#allocation3 + $0x10] sm:$0xff]
        %v1693 = vld [vmem:[#allocation3 + $0x18] sm:$0xff]
        %v1694 = vld [vmem:[#allocation3 + $0x20] sm:$0xff]
        %v1695 = vld [vmem:[#allocation3 + $0x28] sm:$0xff]
        %v1696 = vld [vmem:[#allocation3 + $0x30] sm:$0xff]
        %v1697 = vld [vmem:[#allocation3 + $0x38] sm:$0xff]
        %v1698 = vld [vmem:[#allocation3 + $0x40] sm:$0xff]
        %v1699 = vld [vmem:[#allocation3 + $0x48] sm:$0xff]
        %v1700 = vld [vmem:[#allocation3 + $0x50] sm:$0xff]
        %v1701 = vld [vmem:[#allocation3 + $0x58] sm:$0xff]
        %v1702 = vld [vmem:[#allocation3 + $0x60] sm:$0xff]
        %v1703 = vld [vmem:[#allocation3 + $0x68] sm:$0xff]
        %v1704 = vld [vmem:[#allocation3 + $0x70] sm:$0xff]
        %v1705 = vld [vmem:[#allocation3 + $0x78] sm:$0xff]
        %v1706 = vld [vmem:[#allocation3 + $0x80] sm:$0xff]
        %v1707 = vld [vmem:[#allocation3 + $0x88] sm:$0xff]
        %v1708 = vld [vmem:[#allocation3 + $0x90] sm:$0xff]
        %v1709 = vld [vmem:[#allocation3 + $0x98] sm:$0xff]
        %v1710 = vld [vmem:[#allocation3 + $0xa0] sm:$0xff]
        %v1711 = vld [vmem:[#allocation3 + $0xa8] sm:$0xff]
        %v1712 = vld [vmem:[#allocation3 + $0xb0] sm:$0xff]
        %v1713 = vld [vmem:[#allocation3 + $0xb8] sm:$0xff]
        %v1714 = vld [vmem:[#allocation3 + $0xc0] sm:$0xff]
        %v1715 = vld [vmem:[#allocation3 + $0xc8] sm:$0xff]
        %v1716 = vld [vmem:[#allocation3 + $0xd0] sm:$0xff]
        %v1717 = vld [vmem:[#allocation3 + $0xd8] sm:$0xff]
        %v1718 = vld [vmem:[#allocation3 + $0xe0] sm:$0xff]
        %v1719 = vld [vmem:[#allocation3 + $0xe8] sm:$0xff]
        %v1720 = vld [vmem:[#allocation3 + $0xf0] sm:$0xff]
        %v1721 = vld [vmem:[#allocation3 + $0xf8] sm:$0xff]
        %v1722 = vld [vmem:[#allocation3 + $0x100] sm:$0xff]
        %v1723 = vld [vmem:[#allocation3 + $0x108] sm:$0xff]
        %v1724 = vld [vmem:[#allocation3 + $0x110] sm:$0xff]
        %v1725 = vld [vmem:[#allocation3 + $0x118] sm:$0xff]
        %v1726 = vld [vmem:[#allocation3 + $0x120] sm:$0xff]
        %v1727 = vld [vmem:[#allocation3 + $0x128] sm:$0xff]
        %v1728 = vld [vmem:[#allocation3 + $0x130] sm:$0xff]
        %v1729 = vld [vmem:[#allocation3 + $0x138] sm:$0xff]
        %v1730 = vld [vmem:[#allocation3 + $0x140] sm:$0xff]
        %v1731 = vld [vmem:[#allocation3 + $0x148] sm:$0xff]
        %v1732 = vld [vmem:[#allocation3 + $0x150] sm:$0xff]
        %v1733 = vld [vmem:[#allocation3 + $0x158] sm:$0xff]
        %v1734 = vld [vmem:[#allocation3 + $0x160] sm:$0xff]
        %v1735 = vld [vmem:[#allocation3 + $0x168] sm:$0xff]
        %v1736 = vld [vmem:[#allocation3 + $0x170] sm:$0xff]
        %v1737 = vld [vmem:[#allocation3 + $0x178] sm:$0xff]
        %v1738 = vld [vmem:[#allocation3 + $0x180] sm:$0xff]
        %v1739 = vld [vmem:[#allocation3 + $0x188] sm:$0xff]
        %v1740 = vld [vmem:[#allocation3 + $0x190] sm:$0xff]
        %v1741 = vld [vmem:[#allocation3 + $0x198] sm:$0xff]
        %v1742 = vld [vmem:[#allocation3 + $0x1a0] sm:$0xff]
        %v1743 = vld [vmem:[#allocation3 + $0x1a8] sm:$0xff]
        %v1744 = vld [vmem:[#allocation3 + $0x1b0] sm:$0xff]
        %v1745 = vld [vmem:[#allocation3 + $0x1b8] sm:$0xff]
        %v1746 = vld [vmem:[#allocation3 + $0x1c0] sm:$0xff]
        %v1747 = vld [vmem:[#allocation3 + $0x1c8] sm:$0xff]
        %v1748 = vld [vmem:[#allocation3 + $0x1d0] sm:$0xff]
        %v1749 = vld [vmem:[#allocation3 + $0x1d8] sm:$0xff]
        %v1750 = vld [vmem:[#allocation3 + $0x1e0] sm:$0xff]
        %v1751 = vld [vmem:[#allocation3 + $0x1e8] sm:$0xff]
        %v1752 = vld [vmem:[#allocation3 + $0x1f0] sm:$0xff]
        %v1753 = vld [vmem:[#allocation3 + $0x1f8] sm:$0xff]
        %v1754 = vld [vmem:[#allocation3 + $0x200] sm:$0xff]
        %v1755 = vld [vmem:[#allocation3 + $0x208] sm:$0xff]
        %v1756 = vld [vmem:[#allocation3 + $0x210] sm:$0xff]
        %v1757 = vld [vmem:[#allocation3 + $0x218] sm:$0xff]
        %v1758 = vld [vmem:[#allocation3 + $0x220] sm:$0xff]
        %v1759 = vld [vmem:[#allocation3 + $0x228] sm:$0xff]
        %v1760 = vld [vmem:[#allocation3 + $0x230] sm:$0xff]
        %v1761 = vld [vmem:[#allocation3 + $0x238] sm:$0xff]
        %v1762 = vld [vmem:[#allocation3 + $0x240] sm:$0xff]
        %v1763 = vld [vmem:[#allocation3 + $0x248] sm:$0xff]
        %v1764 = vld [vmem:[#allocation3 + $0x250] sm:$0xff]
        %v1765 = vld [vmem:[#allocation3 + $0x258] sm:$0xff]
        %v1766 = vld [vmem:[#allocation3 + $0x260] sm:$0xff]
        %v1767 = vld [vmem:[#allocation3 + $0x268] sm:$0xff]
        %v1768 = vld [vmem:[#allocation3 + $0x270] sm:$0xff]
        %v1769 = vld [vmem:[#allocation3 + $0x278] sm:$0xff]
        %v1770 = vld [vmem:[#allocation3 + $0x280] sm:$0xff]
        %v1771 = vld [vmem:[#allocation3 + $0x288] sm:$0xff]
        %v1772 = vld [vmem:[#allocation3 + $0x290] sm:$0xff]
        %v1773 = vld [vmem:[#allocation3 + $0x298] sm:$0xff]
        %v1774 = vld [vmem:[#allocation3 + $0x2a0] sm:$0xff]
        %v1775 = vld [vmem:[#allocation3 + $0x2a8] sm:$0xff]
        %v1776 = vld [vmem:[#allocation3 + $0x2b0] sm:$0xff]
        %v1777 = vld [vmem:[#allocation3 + $0x2b8] sm:$0xff]
        %v1778 = vld [vmem:[#allocation3 + $0x2c0] sm:$0xff]
        %v1779 = vld [vmem:[#allocation3 + $0x2c8] sm:$0xff]
        %v1780 = vld [vmem:[#allocation3 + $0x2d0] sm:$0xff]
        %v1781 = vld [vmem:[#allocation3 + $0x2d8] sm:$0xff]
        %v1782 = vld [vmem:[#allocation3 + $0x2e0] sm:$0xff]
        %v1783 = vld [vmem:[#allocation3 + $0x2e8] sm:$0xff]
        %v1784 = vld [vmem:[#allocation3 + $0x2f0] sm:$0xff]
        %v1785 = vld [vmem:[#allocation3 + $0x2f8] sm:$0xff]
        %v1786 = vld [vmem:[%s1] sm:$0xff]
        %v1787 = vld [vmem:[%s1 + $0x8] sm:$0xff]
        %v1788 = vld [vmem:[%s1 + $0x10] sm:$0xff]
        %v1789 = vld [vmem:[%s1 + $0x18] sm:$0xff]
        %v1790 = vld [vmem:[%s1 + $0x20] sm:$0xff]
        %v1791 = vld [vmem:[%s1 + $0x28] sm:$0xff]
        %v1792 = vld [vmem:[%s1 + $0x30] sm:$0xff]
        %v1793 = vld [vmem:[%s1 + $0x38] sm:$0xff]
        %v1794 = vld [vmem:[%s1 + $0x40] sm:$0xff]
        %v1795 = vld [vmem:[%s1 + $0x48] sm:$0xff]
        %v1796 = vld [vmem:[%s1 + $0x50] sm:$0xff]
        %v1797 = vld [vmem:[%s1 + $0x58] sm:$0xff]
        %v1798 = vld [vmem:[%s1 + $0x60] sm:$0xff]
        %v1799 = vld [vmem:[%s1 + $0x68] sm:$0xff]
        %v1800 = vld [vmem:[%s1 + $0x70] sm:$0xff]
        %v1801 = vld [vmem:[%s1 + $0x78] sm:$0xff]
        %v1802 = vld [vmem:[%s1 + $0x80] sm:$0xff]
        %v1803 = vld [vmem:[%s1 + $0x88] sm:$0xff]
        %v1804 = vld [vmem:[%s1 + $0x90] sm:$0xff]
        %v1805 = vld [vmem:[%s1 + $0x98] sm:$0xff]
        %v1806 = vld [vmem:[%s1 + $0xa0] sm:$0xff]
        %v1807 = vld [vmem:[%s1 + $0xa8] sm:$0xff]
        %v1808 = vld [vmem:[%s1 + $0xb0] sm:$0xff]
        %v1809 = vld [vmem:[%s1 + $0xb8] sm:$0xff]
        %v1810 = vld [vmem:[%s1 + $0xc0] sm:$0xff]
        %v1811 = vld [vmem:[%s1 + $0xc8] sm:$0xff]
        %v1812 = vld [vmem:[%s1 + $0xd0] sm:$0xff]
        %v1813 = vld [vmem:[%s1 + $0xd8] sm:$0xff]
        %v1814 = vld [vmem:[%s1 + $0xe0] sm:$0xff]
        %v1815 = vld [vmem:[%s1 + $0xe8] sm:$0xff]
        %v1816 = vld [vmem:[%s1 + $0xf0] sm:$0xff]
        %v1817 = vld [vmem:[%s1 + $0xf8] sm:$0xff]
        %v1818 = vld [vmem:[%s1 + $0x100] sm:$0xff]
        %v1819 = vld [vmem:[%s1 + $0x108] sm:$0xff]
        %v1820 = vld [vmem:[%s1 + $0x110] sm:$0xff]
        %v1821 = vld [vmem:[%s1 + $0x118] sm:$0xff]
        %v1822 = vld [vmem:[%s2] sm:$0x1]
        %v1824 = vlaneseq
        %v1825 = vshrl.u32 %v1824, 7
        %v1826 = vsub.s32 0, %v1825
        %v1827 = vrot.slane %v1822, %v1826
        %v1830 = vsel %vm309, %v1692, 0
        %v1833 = vsel %vm309, %v1695, 0
        %v1836 = vsel %vm309, %v1698, 0
        %v1839 = vsel %vm309, %v1701, 0
        %v1842 = vsel %vm309, %v1704, 0
        %v1845 = vsel %vm309, %v1707, 0
        %v1848 = vsel %vm309, %v1710, 0
        %v1851 = vsel %vm309, %v1713, 0
        %v1854 = vsel %vm309, %v1716, 0
        %v1857 = vsel %vm309, %v1719, 0
        %v1860 = vsel %vm309, %v1722, 0
        %v1863 = vsel %vm309, %v1725, 0
        %v1866 = vsel %vm309, %v1728, 0
        %v1869 = vsel %vm309, %v1731, 0
        %v1872 = vsel %vm309, %v1734, 0
        %v1875 = vsel %vm309, %v1737, 0
        %v1878 = vsel %vm309, %v1740, 0
        %v1881 = vsel %vm309, %v1743, 0
        %v1884 = vsel %vm309, %v1746, 0
        %v1887 = vsel %vm309, %v1749, 0
        %v1890 = vsel %vm309, %v1752, 0
        %v1893 = vsel %vm309, %v1755, 0
        %v1896 = vsel %vm309, %v1758, 0
        %v1899 = vsel %vm309, %v1761, 0
        %v1902 = vsel %vm309, %v1764, 0
        %v1905 = vsel %vm309, %v1767, 0
        %v1908 = vsel %vm309, %v1770, 0
        %v1911 = vsel %vm309, %v1773, 0
        %v1914 = vsel %vm309, %v1776, 0
        %v1917 = vsel %vm309, %v1779, 0
        %v1920 = vsel %vm309, %v1782, 0
        %v1923 = vsel %vm309, %v1785, 0
        %1925 = vmatprep.subr.mxu0 0.0
        %1926 = vmatpush1.msra.mxu0 %v1786
        %1927 = vmatprep.subr.mxu0 0.0
        %1928 = vmatpush1.msra.mxu0 %v1787
        %1929 = vmatprep.subr.mxu0 0.0
        %1930 = vmatpush1.msra.mxu0 %v1788
        %1931 = vmatprep.subr.mxu0 0.0
        %1932 = vmatpush1.msra.mxu0 %v1789
        %1933 = vmatprep.subr.mxu0 0.0
        %1934 = vmatpush1.msra.mxu0 %v1790
        %1935 = vmatprep.subr.mxu0 0.0
        %1936 = vmatpush1.msra.mxu0 %v1791
        %1937 = vmatprep.subr.mxu0 0.0
        %1938 = vmatpush1.msra.mxu0 %v1792
        %1939 = vmatprep.subr.mxu0 0.0
        %1940 = vmatpush1.msra.mxu0 %v1793
        %1941 = vmatprep.subr.mxu0 0.0
        %1942 = vmatpush1.msra.mxu0 %v1794
        %1943 = vmatprep.subr.mxu0 0.0
        %1944 = vmatpush1.msra.mxu0 %v1795
        %1945 = vmatprep.subr.mxu0 0.0
        %1946 = vmatpush1.msra.mxu0 %v1796
        %1947 = vmatprep.subr.mxu0 0.0
        %1948 = vmatpush1.msra.mxu0 %v1797
        %1949 = vmatprep.subr.mxu0 0.0
        %1950 = vmatpush1.msra.mxu0 %v1798
        %1951 = vmatprep.subr.mxu0 0.0
        %1952 = vmatpush1.msra.mxu0 %v1799
        %1953 = vmatprep.subr.mxu0 0.0
        %1954 = vmatpush1.msra.mxu0 %v1800
        %1955 = vmatprep.subr.mxu0 0.0
        %1956 = vmatpush1.msra.mxu0 %v1801
        %1957 = vmatprep.subr.mxu0 0.0
        %1958 = vmatpush1.msra.mxu0 %v1802
        %1959 = vmatprep.subr.mxu0 0.0
        %1960 = vmatpush1.msra.mxu0 %v1803
        %1961 = vmatprep.subr.mxu0 0.0
        %1962 = vmatpush1.msra.mxu0 %v1804
        %1963 = vmatprep.subr.mxu0 0.0
        %1964 = vmatpush1.msra.mxu0 %v1805
        %1965 = vmatprep.subr.mxu0 0.0
        %1966 = vmatpush1.msra.mxu0 %v1806
        %1967 = vmatprep.subr.mxu0 0.0
        %1968 = vmatpush1.msra.mxu0 %v1807
        %1969 = vmatprep.subr.mxu0 0.0
        %1970 = vmatpush1.msra.mxu0 %v1808
        %1971 = vmatprep.subr.mxu0 0.0
        %1972 = vmatpush1.msra.mxu0 %v1809
        %1973 = vmatprep.subr.mxu0 0.0
        %1974 = vmatpush1.msra.mxu0 %v1810
        %1975 = vmatprep.subr.mxu0 0.0
        %1976 = vmatpush1.msra.mxu0 %v1811
        %1977 = vmatprep.subr.mxu0 0.0
        %1978 = vmatpush1.msra.mxu0 %v1812
        %1979 = vmatprep.subr.mxu0 0.0
        %1980 = vmatpush1.msra.mxu0 %v1813
        %1981 = vmatprep.subr.mxu0 0.0
        %1982 = vmatpush1.msra.mxu0 %v1814
        %1983 = vmatprep.subr.mxu0 0.0
        %1984 = vmatpush1.msra.mxu0 %v1815
        %1985 = vmatprep.subr.mxu0 0.0
        %1986 = vmatpush1.msra.mxu0 %v1816
        %1987 = vmatprep.subr.mxu0 0.0
        %1988 = vmatpush1.msra.mxu0 %v1817
        %1989 = vmatprep.mubr.f32.mxu0 %v1691
        %1990 = vmatmul.mubr.f32.gmra.mrb[0].mxu0 %v1690
        %v1991 = vpop.f32.mrb[0].mxu0
        %v1992 = vadd.f32 %v1827, %v1991
        %v1993 = vpop.f32.mrb[0].mxu0
        %1994 = vmatprep.mubr.f32.mxu0 %v1694
        %1995 = vmatmul.mubr.f32.gmra.mrb[0].mxu0 %v1693
        %v1996 = vpop.f32.mrb[0].mxu0
        %v1997 = vadd.f32 %v1827, %v1996
        %v1998 = vpop.f32.mrb[0].mxu0
        %1999 = vmatprep.mubr.f32.mxu0 %v1697
        %2000 = vmatmul.mubr.f32.gmra.mrb[0].mxu0 %v1696
        %v2001 = vpop.f32.mrb[0].mxu0
        %v2002 = vadd.f32 %v1827, %v2001
        %v2003 = vpop.f32.mrb[0].mxu0
        %2004 = vmatprep.mubr.f32.mxu0 %v1700
        %2005 = vmatmul.mubr.f32.gmra.mrb[0].mxu0 %v1699
        %v2006 = vpop.f32.mrb[0].mxu0
        %v2007 = vadd.f32 %v1827, %v2006
        %v2008 = vpop.f32.mrb[0].mxu0
        %2009 = vmatprep.mubr.f32.mxu0 %v1703
        %2010 = vmatmul.mubr.f32.gmra.mrb[0].mxu0 %v1702
        %v2011 = vpop.f32.mrb[0].mxu0
        %v2012 = vadd.f32 %v1827, %v2011
        %v2013 = vpop.f32.mrb[0].mxu0
        %2014 = vmatprep.mubr.f32.mxu0 %v1706
        %2015 = vmatmul.mubr.f32.gmra.mrb[0].mxu0 %v1705
        %v2016 = vpop.f32.mrb[0].mxu0
        %v2017 = vadd.f32 %v1827, %v2016
        %v2018 = vpop.f32.mrb[0].mxu0
        %2019 = vmatprep.mubr.f32.mxu0 %v1709
        %2020 = vmatmul.mubr.f32.gmra.mrb[0].mxu0 %v1708
        %v2021 = vpop.f32.mrb[0].mxu0
        %v2022 = vadd.f32 %v1827, %v2021
        %v2023 = vpop.f32.mrb[0].mxu0
        %2024 = vmatprep.mubr.f32.mxu0 %v1712
        %2025 = vmatmul.mubr.f32.gmra.mrb[0].mxu0 %v1711
        %v2026 = vpop.f32.mrb[0].mxu0
        %v2027 = vadd.f32 %v1827, %v2026
        %v2028 = vpop.f32.mrb[0].mxu0
        %2029 = vmatprep.mubr.f32.mxu0 %v1715
        %2030 = vmatmul.mubr.f32.gmra.mrb[0].mxu0 %v1714
        %v2031 = vpop.f32.mrb[0].mxu0
        %v2032 = vadd.f32 %v1827, %v2031
        %v2033 = vpop.f32.mrb[0].mxu0
        %2034 = vmatprep.mubr.f32.mxu0 %v1718
        %2035 = vmatmul.mubr.f32.gmra.mrb[0].mxu0 %v1717
        %v2036 = vpop.f32.mrb[0].mxu0
        %v2037 = vadd.f32 %v1827, %v2036
        %v2038 = vpop.f32.mrb[0].mxu0
        %2039 = vmatprep.mubr.f32.mxu0 %v1721
        %2040 = vmatmul.mubr.f32.gmra.mrb[0].mxu0 %v1720
        %v2041 = vpop.f32.mrb[0].mxu0
        %v2042 = vadd.f32 %v1827, %v2041
        %v2043 = vpop.f32.mrb[0].mxu0
        %2044 = vmatprep.mubr.f32.mxu0 %v1724
        %2045 = vmatmul.mubr.f32.gmra.mrb[0].mxu0 %v1723
        %v2046 = vpop.f32.mrb[0].mxu0
        %v2047 = vadd.f32 %v1827, %v2046
        %v2048 = vpop.f32.mrb[0].mxu0
        %2049 = vmatprep.mubr.f32.mxu0 %v1727
        %2050 = vmatmul.mubr.f32.gmra.mrb[0].mxu0 %v1726
        %v2051 = vpop.f32.mrb[0].mxu0
        %v2052 = vadd.f32 %v1827, %v2051
        %v2053 = vpop.f32.mrb[0].mxu0
        %2054 = vmatprep.mubr.f32.mxu0 %v1730
        %2055 = vmatmul.mubr.f32.gmra.mrb[0].mxu0 %v1729
        %v2056 = vpop.f32.mrb[0].mxu0
        %v2057 = vadd.f32 %v1827, %v2056
        %v2058 = vpop.f32.mrb[0].mxu0
        %2059 = vmatprep.mubr.f32.mxu0 %v1733
        %2060 = vmatmul.mubr.f32.gmra.mrb[0].mxu0 %v1732
        %v2061 = vpop.f32.mrb[0].mxu0
        %v2062 = vadd.f32 %v1827, %v2061
        %v2063 = vpop.f32.mrb[0].mxu0
        %2064 = vmatprep.mubr.f32.mxu0 %v1736
        %2065 = vmatmul.mubr.f32.gmra.mrb[0].mxu0 %v1735
        %v2066 = vpop.f32.mrb[0].mxu0
        %v2067 = vadd.f32 %v1827, %v2066
        %v2068 = vpop.f32.mrb[0].mxu0
        %2069 = vmatprep.mubr.f32.mxu0 %v1739
        %2070 = vmatmul.mubr.f32.gmra.mrb[0].mxu0 %v1738
        %v2071 = vpop.f32.mrb[0].mxu0
        %v2072 = vadd.f32 %v1827, %v2071
        %v2073 = vpop.f32.mrb[0].mxu0
        %2074 = vmatprep.mubr.f32.mxu0 %v1742
        %2075 = vmatmul.mubr.f32.gmra.mrb[0].mxu0 %v1741
        %v2076 = vpop.f32.mrb[0].mxu0
        %v2077 = vadd.f32 %v1827, %v2076
        %v2078 = vpop.f32.mrb[0].mxu0
        %2079 = vmatprep.mubr.f32.mxu0 %v1745
        %2080 = vmatmul.mubr.f32.gmra.mrb[0].mxu0 %v1744
        %v2081 = vpop.f32.mrb[0].mxu0
        %v2082 = vadd.f32 %v1827, %v2081
        %v2083 = vpop.f32.mrb[0].mxu0
        %2084 = vmatprep.mubr.f32.mxu0 %v1748
        %2085 = vmatmul.mubr.f32.gmra.mrb[0].mxu0 %v1747
        %v2086 = vpop.f32.mrb[0].mxu0
        %v2087 = vadd.f32 %v1827, %v2086
        %v2088 = vpop.f32.mrb[0].mxu0
        %2089 = vmatprep.mubr.f32.mxu0 %v1751
        %2090 = vmatmul.mubr.f32.gmra.mrb[0].mxu0 %v1750
        %v2091 = vpop.f32.mrb[0].mxu0
        %v2092 = vadd.f32 %v1827, %v2091
        %v2093 = vpop.f32.mrb[0].mxu0
        %2094 = vmatprep.mubr.f32.mxu0 %v1754
        %2095 = vmatmul.mubr.f32.gmra.mrb[0].mxu0 %v1753
        %v2096 = vpop.f32.mrb[0].mxu0
        %v2097 = vadd.f32 %v1827, %v2096
        %v2098 = vpop.f32.mrb[0].mxu0
        %2099 = vmatprep.mubr.f32.mxu0 %v1757
        %2100 = vmatmul.mubr.f32.gmra.mrb[0].mxu0 %v1756
        %v2101 = vpop.f32.mrb[0].mxu0
        %v2102 = vadd.f32 %v1827, %v2101
        %v2103 = vpop.f32.mrb[0].mxu0
        %2104 = vmatprep.mubr.f32.mxu0 %v1760
        %2105 = vmatmul.mubr.f32.gmra.mrb[0].mxu0 %v1759
        %v2106 = vpop.f32.mrb[0].mxu0
        %v2107 = vadd.f32 %v1827, %v2106
        %v2108 = vpop.f32.mrb[0].mxu0
        %2109 = vmatprep.mubr.f32.mxu0 %v1763
        %2110 = vmatmul.mubr.f32.gmra.mrb[0].mxu0 %v1762
        %v2111 = vpop.f32.mrb[0].mxu0
        %v2112 = vadd.f32 %v1827, %v2111
        %v2113 = vpop.f32.mrb[0].mxu0
        %2114 = vmatprep.mubr.f32.mxu0 %v1766
        %2115 = vmatmul.mubr.f32.gmra.mrb[0].mxu0 %v1765
        %v2116 = vpop.f32.mrb[0].mxu0
        %v2117 = vadd.f32 %v1827, %v2116
        %v2118 = vpop.f32.mrb[0].mxu0
        %2119 = vmatprep.mubr.f32.mxu0 %v1769
        %2120 = vmatmul.mubr.f32.gmra.mrb[0].mxu0 %v1768
        %v2121 = vpop.f32.mrb[0].mxu0
        %v2122 = vadd.f32 %v1827, %v2121
        %v2123 = vpop.f32.mrb[0].mxu0
        %2124 = vmatprep.mubr.f32.mxu0 %v1772
        %2125 = vmatmul.mubr.f32.gmra.mrb[0].mxu0 %v1771
        %v2126 = vpop.f32.mrb[0].mxu0
        %v2127 = vadd.f32 %v1827, %v2126
        %v2128 = vpop.f32.mrb[0].mxu0
        %2129 = vmatprep.mubr.f32.mxu0 %v1775
        %2130 = vmatmul.mubr.f32.gmra.mrb[0].mxu0 %v1774
        %v2131 = vpop.f32.mrb[0].mxu0
        %v2132 = vadd.f32 %v1827, %v2131
        %v2133 = vpop.f32.mrb[0].mxu0
        %2134 = vmatprep.mubr.f32.mxu0 %v1778
        %2135 = vmatmul.mubr.f32.gmra.mrb[0].mxu0 %v1777
        %v2136 = vpop.f32.mrb[0].mxu0
        %v2137 = vadd.f32 %v1827, %v2136
        %v2138 = vpop.f32.mrb[0].mxu0
        %2139 = vmatprep.mubr.f32.mxu0 %v1781
        %2140 = vmatmul.mubr.f32.gmra.mrb[0].mxu0 %v1780
        %v2141 = vpop.f32.mrb[0].mxu0
        %v2142 = vadd.f32 %v1827, %v2141
        %v2143 = vpop.f32.mrb[0].mxu0
        %2144 = vmatprep.mubr.f32.mxu0 %v1784
        %2145 = vmatmul.mubr.f32.gmra.mrb[0].mxu0 %v1783
        %v2146 = vpop.f32.mrb[0].mxu0
        %v2147 = vadd.f32 %v1827, %v2146
        %v2148 = vpop.f32.mrb[0].mxu0
        %2149 = vdwg.mxu0
        %2150 = vmatprep.subr.mxu0 0.0
        %2151 = vmatpush1.msra.mxu0 %v1818
        %2152 = vmatprep.subr.mxu0 0.0
        %2153 = vmatpush1.msra.mxu0 %v1819
        %2154 = vmatprep.subr.mxu0 0.0
        %2155 = vmatpush1.msra.mxu0 %v1820
        %2156 = vmatprep.subr.mxu0 0.0
        %2157 = vmatpush1.msra.mxu0 %v1821
        %2158 = vmatprep.subr.mxu0 0.0
        %2159 = vmatpush1.msra.mxu0 0.0
        %2160 = vmatprep.subr.mxu0 0.0
        %2161 = vmatpush1.msra.mxu0 0.0
        %2162 = vmatprep.subr.mxu0 0.0
        %2163 = vmatpush1.msra.mxu0 0.0
        %2164 = vmatprep.subr.mxu0 0.0
        %2165 = vmatpush1.msra.mxu0 0.0
        %2166 = vmatprep.subr.mxu0 0.0
        %2167 = vmatpush1.msra.mxu0 0.0
        %2168 = vmatprep.subr.mxu0 0.0
        %2169 = vmatpush1.msra.mxu0 0.0
        %2170 = vmatprep.subr.mxu0 0.0
        %2171 = vmatpush1.msra.mxu0 0.0
        %2172 = vmatprep.subr.mxu0 0.0
        %2173 = vmatpush1.msra.mxu0 0.0
        %2174 = vmatprep.subr.mxu0 0.0
        %2175 = vmatpush1.msra.mxu0 0.0
        %2176 = vmatprep.subr.mxu0 0.0
        %2177 = vmatpush1.msra.mxu0 0.0
        %2178 = vmatprep.subr.mxu0 0.0
        %2179 = vmatpush1.msra.mxu0 0.0
        %2180 = vmatprep.subr.mxu0 0.0
        %2181 = vmatpush1.msra.mxu0 0.0
        %2182 = vmatprep.subr.mxu0 0.0
        %2183 = vmatpush1.msra.mxu0 0.0
        %2184 = vmatprep.subr.mxu0 0.0
        %2185 = vmatpush1.msra.mxu0 0.0
        %2186 = vmatprep.subr.mxu0 0.0
        %2187 = vmatpush1.msra.mxu0 0.0
        %2188 = vmatprep.subr.mxu0 0.0
        %2189 = vmatpush1.msra.mxu0 0.0
        %2190 = vmatprep.subr.mxu0 0.0
        %2191 = vmatpush1.msra.mxu0 0.0
        %2192 = vmatprep.subr.mxu0 0.0
        %2193 = vmatpush1.msra.mxu0 0.0
        %2194 = vmatprep.subr.mxu0 0.0
        %2195 = vmatpush1.msra.mxu0 0.0
        %2196 = vmatprep.subr.mxu0 0.0
        %2197 = vmatpush1.msra.mxu0 0.0
        %2198 = vmatprep.subr.mxu0 0.0
        %2199 = vmatpush1.msra.mxu0 0.0
        %2200 = vmatprep.subr.mxu0 0.0
        %2201 = vmatpush1.msra.mxu0 0.0
        %2202 = vmatprep.subr.mxu0 0.0
        %2203 = vmatpush1.msra.mxu0 0.0
        %2204 = vmatprep.subr.mxu0 0.0
        %2205 = vmatpush1.msra.mxu0 0.0
        %2206 = vmatprep.subr.mxu0 0.0
        %2207 = vmatpush1.msra.mxu0 0.0
        %2208 = vmatprep.subr.mxu0 0.0
        %2209 = vmatpush1.msra.mxu0 0.0
        %2210 = vmatprep.subr.mxu0 0.0
        %2211 = vmatpush1.msra.mxu0 0.0
        %2212 = vmatprep.subr.mxu0 0.0
        %2213 = vmatpush1.msra.mxu0 0.0
        %2214 = vmatprep.mubr.f32.mxu0 0.0
        %2215 = vmatmul.mubr.f32.gmra.mrb[0].mxu0 %v1830
        %v2216 = vpop.f32.mrb[0].mxu0
        %v2217 = vadd.f32 %v1992, %v2216
        %v2218 = vpop.f32.mrb[0].mxu0
        %2219 = vmatprep.mubr.f32.mxu0 0.0
        %2220 = vmatmul.mubr.f32.gmra.mrb[0].mxu0 %v1833
        %v2221 = vpop.f32.mrb[0].mxu0
        %v2222 = vadd.f32 %v1997, %v2221
        %v2223 = vpop.f32.mrb[0].mxu0
        %2224 = vmatprep.mubr.f32.mxu0 0.0
        %2225 = vmatmul.mubr.f32.gmra.mrb[0].mxu0 %v1836
        %v2226 = vpop.f32.mrb[0].mxu0
        %v2227 = vadd.f32 %v2002, %v2226
        %v2228 = vpop.f32.mrb[0].mxu0
        %2229 = vmatprep.mubr.f32.mxu0 0.0
        %2230 = vmatmul.mubr.f32.gmra.mrb[0].mxu0 %v1839
        %v2231 = vpop.f32.mrb[0].mxu0
        %v2232 = vadd.f32 %v2007, %v2231
        %v2233 = vpop.f32.mrb[0].mxu0
        %2234 = vmatprep.mubr.f32.mxu0 0.0
        %2235 = vmatmul.mubr.f32.gmra.mrb[0].mxu0 %v1842
        %v2236 = vpop.f32.mrb[0].mxu0
        %v2237 = vadd.f32 %v2012, %v2236
        %v2238 = vpop.f32.mrb[0].mxu0
        %2239 = vmatprep.mubr.f32.mxu0 0.0
        %2240 = vmatmul.mubr.f32.gmra.mrb[0].mxu0 %v1845
        %v2241 = vpop.f32.mrb[0].mxu0
        %v2242 = vadd.f32 %v2017, %v2241
        %v2243 = vpop.f32.mrb[0].mxu0
        %2244 = vmatprep.mubr.f32.mxu0 0.0
        %2245 = vmatmul.mubr.f32.gmra.mrb[0].mxu0 %v1848
        %v2246 = vpop.f32.mrb[0].mxu0
        %v2247 = vadd.f32 %v2022, %v2246
        %v2248 = vpop.f32.mrb[0].mxu0
        %2249 = vmatprep.mubr.f32.mxu0 0.0
        %2250 = vmatmul.mubr.f32.gmra.mrb[0].mxu0 %v1851
        %v2251 = vpop.f32.mrb[0].mxu0
        %v2252 = vadd.f32 %v2027, %v2251
        %v2253 = vpop.f32.mrb[0].mxu0
        %2254 = vmatprep.mubr.f32.mxu0 0.0
        %2255 = vmatmul.mubr.f32.gmra.mrb[0].mxu0 %v1854
        %v2256 = vpop.f32.mrb[0].mxu0
        %v2257 = vadd.f32 %v2032, %v2256
        %v2258 = vpop.f32.mrb[0].mxu0
        %2259 = vmatprep.mubr.f32.mxu0 0.0
        %2260 = vmatmul.mubr.f32.gmra.mrb[0].mxu0 %v1857
        %v2261 = vpop.f32.mrb[0].mxu0
        %v2262 = vadd.f32 %v2037, %v2261
        %v2263 = vpop.f32.mrb[0].mxu0
        %2264 = vmatprep.mubr.f32.mxu0 0.0
        %2265 = vmatmul.mubr.f32.gmra.mrb[0].mxu0 %v1860
        %v2266 = vpop.f32.mrb[0].mxu0
        %v2267 = vadd.f32 %v2042, %v2266
        %v2268 = vpop.f32.mrb[0].mxu0
        %2269 = vmatprep.mubr.f32.mxu0 0.0
        %2270 = vmatmul.mubr.f32.gmra.mrb[0].mxu0 %v1863
        %v2271 = vpop.f32.mrb[0].mxu0
        %v2272 = vadd.f32 %v2047, %v2271
        %v2273 = vpop.f32.mrb[0].mxu0
        %2274 = vmatprep.mubr.f32.mxu0 0.0
        %2275 = vmatmul.mubr.f32.gmra.mrb[0].mxu0 %v1866
        %v2276 = vpop.f32.mrb[0].mxu0
        %v2277 = vadd.f32 %v2052, %v2276
        %v2278 = vpop.f32.mrb[0].mxu0
        %2279 = vmatprep.mubr.f32.mxu0 0.0
        %2280 = vmatmul.mubr.f32.gmra.mrb[0].mxu0 %v1869
        %v2281 = vpop.f32.mrb[0].mxu0
        %v2282 = vadd.f32 %v2057, %v2281
        %v2283 = vpop.f32.mrb[0].mxu0
        %2284 = vmatprep.mubr.f32.mxu0 0.0
        %2285 = vmatmul.mubr.f32.gmra.mrb[0].mxu0 %v1872
        %v2286 = vpop.f32.mrb[0].mxu0
        %v2287 = vadd.f32 %v2062, %v2286
        %v2288 = vpop.f32.mrb[0].mxu0
        %2289 = vmatprep.mubr.f32.mxu0 0.0
        %2290 = vmatmul.mubr.f32.gmra.mrb[0].mxu0 %v1875
        %v2291 = vpop.f32.mrb[0].mxu0
        %v2292 = vadd.f32 %v2067, %v2291
        %v2293 = vpop.f32.mrb[0].mxu0
        %2294 = vmatprep.mubr.f32.mxu0 0.0
        %2295 = vmatmul.mubr.f32.gmra.mrb[0].mxu0 %v1878
        %v2296 = vpop.f32.mrb[0].mxu0
        %v2297 = vadd.f32 %v2072, %v2296
        %v2298 = vpop.f32.mrb[0].mxu0
        %2299 = vmatprep.mubr.f32.mxu0 0.0
        %2300 = vmatmul.mubr.f32.gmra.mrb[0].mxu0 %v1881
        %v2301 = vpop.f32.mrb[0].mxu0
        %v2302 = vadd.f32 %v2077, %v2301
        %v2303 = vpop.f32.mrb[0].mxu0
        %2304 = vmatprep.mubr.f32.mxu0 0.0
        %2305 = vmatmul.mubr.f32.gmra.mrb[0].mxu0 %v1884
        %v2306 = vpop.f32.mrb[0].mxu0
        %v2307 = vadd.f32 %v2082, %v2306
        %v2308 = vpop.f32.mrb[0].mxu0
        %2309 = vmatprep.mubr.f32.mxu0 0.0
        %2310 = vmatmul.mubr.f32.gmra.mrb[0].mxu0 %v1887
        %v2311 = vpop.f32.mrb[0].mxu0
        %v2312 = vadd.f32 %v2087, %v2311
        %v2313 = vpop.f32.mrb[0].mxu0
        %2314 = vmatprep.mubr.f32.mxu0 0.0
        %2315 = vmatmul.mubr.f32.gmra.mrb[0].mxu0 %v1890
        %v2316 = vpop.f32.mrb[0].mxu0
        %v2317 = vadd.f32 %v2092, %v2316
        %v2318 = vpop.f32.mrb[0].mxu0
        %2319 = vmatprep.mubr.f32.mxu0 0.0
        %2320 = vmatmul.mubr.f32.gmra.mrb[0].mxu0 %v1893
        %v2321 = vpop.f32.mrb[0].mxu0
        %v2322 = vadd.f32 %v2097, %v2321
        %v2323 = vpop.f32.mrb[0].mxu0
        %2324 = vmatprep.mubr.f32.mxu0 0.0
        %2325 = vmatmul.mubr.f32.gmra.mrb[0].mxu0 %v1896
        %v2326 = vpop.f32.mrb[0].mxu0
        %v2327 = vadd.f32 %v2102, %v2326
        %v2328 = vpop.f32.mrb[0].mxu0
        %2329 = vmatprep.mubr.f32.mxu0 0.0
        %2330 = vmatmul.mubr.f32.gmra.mrb[0].mxu0 %v1899
        %v2331 = vpop.f32.mrb[0].mxu0
        %v2332 = vadd.f32 %v2107, %v2331
        %v2333 = vpop.f32.mrb[0].mxu0
        %2334 = vmatprep.mubr.f32.mxu0 0.0
        %2335 = vmatmul.mubr.f32.gmra.mrb[0].mxu0 %v1902
        %v2336 = vpop.f32.mrb[0].mxu0
        %v2337 = vadd.f32 %v2112, %v2336
        %v2338 = vpop.f32.mrb[0].mxu0
        %2339 = vmatprep.mubr.f32.mxu0 0.0
        %2340 = vmatmul.mubr.f32.gmra.mrb[0].mxu0 %v1905
        %v2341 = vpop.f32.mrb[0].mxu0
        %v2342 = vadd.f32 %v2117, %v2341
        %v2343 = vpop.f32.mrb[0].mxu0
        %2344 = vmatprep.mubr.f32.mxu0 0.0
        %2345 = vmatmul.mubr.f32.gmra.mrb[0].mxu0 %v1908
        %v2346 = vpop.f32.mrb[0].mxu0
        %v2347 = vadd.f32 %v2122, %v2346
        %v2348 = vpop.f32.mrb[0].mxu0
        %2349 = vmatprep.mubr.f32.mxu0 0.0
        %2350 = vmatmul.mubr.f32.gmra.mrb[0].mxu0 %v1911
        %v2351 = vpop.f32.mrb[0].mxu0
        %v2352 = vadd.f32 %v2127, %v2351
        %v2353 = vpop.f32.mrb[0].mxu0
        %2354 = vmatprep.mubr.f32.mxu0 0.0
        %2355 = vmatmul.mubr.f32.gmra.mrb[0].mxu0 %v1914
        %v2356 = vpop.f32.mrb[0].mxu0
        %v2357 = vadd.f32 %v2132, %v2356
        %v2358 = vpop.f32.mrb[0].mxu0
        %2359 = vmatprep.mubr.f32.mxu0 0.0
        %2360 = vmatmul.mubr.f32.gmra.mrb[0].mxu0 %v1917
        %v2361 = vpop.f32.mrb[0].mxu0
        %v2362 = vadd.f32 %v2137, %v2361
        %v2363 = vpop.f32.mrb[0].mxu0
        %2364 = vmatprep.mubr.f32.mxu0 0.0
        %2365 = vmatmul.mubr.f32.gmra.mrb[0].mxu0 %v1920
        %v2366 = vpop.f32.mrb[0].mxu0
        %v2367 = vadd.f32 %v2142, %v2366
        %v2368 = vpop.f32.mrb[0].mxu0
        %2369 = vmatprep.mubr.f32.mxu0 0.0
        %2370 = vmatmul.mubr.f32.gmra.mrb[0].mxu0 %v1923
        %v2371 = vpop.f32.mrb[0].mxu0
        %v2372 = vadd.f32 %v2147, %v2371
        %v2373 = vpop.f32.mrb[0].mxu0
        %2374 = vdwg.mxu0
        %2375 = vst.msk [vmem:[%s212] sm:$0xff] %vm309, %v2217
        %2376 = vst.msk [vmem:[%s212 + $0x8] sm:$0xff] %vm309, %v2222
        %2377 = vst.msk [vmem:[%s212 + $0x10] sm:$0xff] %vm309, %v2227
        %2378 = vst.msk [vmem:[%s212 + $0x18] sm:$0xff] %vm309, %v2232
        %2379 = vst.msk [vmem:[%s212 + $0x20] sm:$0xff] %vm309, %v2237
        %2380 = vst.msk [vmem:[%s212 + $0x28] sm:$0xff] %vm309, %v2242
        %2381 = vst.msk [vmem:[%s212 + $0x30] sm:$0xff] %vm309, %v2247
        %2382 = vst.msk [vmem:[%s212 + $0x38] sm:$0xff] %vm309, %v2252
        %2383 = vst.msk [vmem:[%s212 + $0x40] sm:$0xff] %vm309, %v2257
        %2384 = vst.msk [vmem:[%s212 + $0x48] sm:$0xff] %vm309, %v2262
        %2385 = vst.msk [vmem:[%s212 + $0x50] sm:$0xff] %vm309, %v2267
        %2386 = vst.msk [vmem:[%s212 + $0x58] sm:$0xff] %vm309, %v2272
        %2387 = vst.msk [vmem:[%s212 + $0x60] sm:$0xff] %vm309, %v2277
        %2388 = vst.msk [vmem:[%s212 + $0x68] sm:$0xff] %vm309, %v2282
        %2389 = vst.msk [vmem:[%s212 + $0x70] sm:$0xff] %vm309, %v2287
        %2390 = vst.msk [vmem:[%s212 + $0x78] sm:$0xff] %vm309, %v2292
        %2391 = vst.msk [vmem:[%s212 + $0x80] sm:$0xff] %vm309, %v2297
        %2392 = vst.msk [vmem:[%s212 + $0x88] sm:$0xff] %vm309, %v2302
        %2393 = vst.msk [vmem:[%s212 + $0x90] sm:$0xff] %vm309, %v2307
        %2394 = vst.msk [vmem:[%s212 + $0x98] sm:$0xff] %vm309, %v2312
        %2395 = vst.msk [vmem:[%s212 + $0xa0] sm:$0xff] %vm309, %v2317
        %2396 = vst.msk [vmem:[%s212 + $0xa8] sm:$0xff] %vm309, %v2322
        %2397 = vst.msk [vmem:[%s212 + $0xb0] sm:$0xff] %vm309, %v2327
        %2398 = vst.msk [vmem:[%s212 + $0xb8] sm:$0xff] %vm309, %v2332
        %2399 = vst.msk [vmem:[%s212 + $0xc0] sm:$0xff] %vm309, %v2337
        %2400 = vst.msk [vmem:[%s212 + $0xc8] sm:$0xff] %vm309, %v2342
        %2401 = vst.msk [vmem:[%s212 + $0xd0] sm:$0xff] %vm309, %v2347
        %2402 = vst.msk [vmem:[%s212 + $0xd8] sm:$0xff] %vm309, %v2352
        %2403 = vst.msk [vmem:[%s212 + $0xe0] sm:$0xff] %vm309, %v2357
        %2404 = vst.msk [vmem:[%s212 + $0xe8] sm:$0xff] %vm309, %v2362
        %2405 = vst.msk [vmem:[%s212 + $0xf0] sm:$0xff] %vm309, %v2367
        %2406 = vst.msk [vmem:[%s212 + $0xf8] sm:$0xff] %vm309, %v2372
        %v2407 = vld [vmem:[#allocation4] sm:$0x1]
        %v2408 = vsel %vm309, %v2217, 0.0
        %v2409 = vsel %vm309, %v2222, 0.0
        %v2410 = vadd.f32 %v2408, %v2409
        %v2411 = vsel %vm309, %v2227, 0.0
        %v2412 = vadd.f32 %v2410, %v2411
        %v2413 = vsel %vm309, %v2232, 0.0
        %v2414 = vadd.f32 %v2412, %v2413
        %v2415 = vsel %vm309, %v2237, 0.0
        %v2416 = vadd.f32 %v2414, %v2415
        %v2417 = vsel %vm309, %v2242, 0.0
        %v2418 = vadd.f32 %v2416, %v2417
        %v2419 = vsel %vm309, %v2247, 0.0
        %v2420 = vadd.f32 %v2418, %v2419
        %v2421 = vsel %vm309, %v2252, 0.0
        %v2422 = vadd.f32 %v2420, %v2421
        %v2423 = vsel %vm309, %v2257, 0.0
        %v2424 = vadd.f32 %v2422, %v2423
        %v2425 = vsel %vm309, %v2262, 0.0
        %v2426 = vadd.f32 %v2424, %v2425
        %v2427 = vsel %vm309, %v2267, 0.0
        %v2428 = vadd.f32 %v2426, %v2427
        %v2429 = vsel %vm309, %v2272, 0.0
        %v2430 = vadd.f32 %v2428, %v2429
        %v2431 = vsel %vm309, %v2277, 0.0
        %v2432 = vadd.f32 %v2430, %v2431
        %v2433 = vsel %vm309, %v2282, 0.0
        %v2434 = vadd.f32 %v2432, %v2433
        %v2435 = vsel %vm309, %v2287, 0.0
        %v2436 = vadd.f32 %v2434, %v2435
        %v2437 = vsel %vm309, %v2292, 0.0
        %v2438 = vadd.f32 %v2436, %v2437
        %v2439 = vsel %vm309, %v2297, 0.0
        %v2440 = vadd.f32 %v2438, %v2439
        %v2441 = vsel %vm309, %v2302, 0.0
        %v2442 = vadd.f32 %v2440, %v2441
        %v2443 = vsel %vm309, %v2307, 0.0
        %v2444 = vadd.f32 %v2442, %v2443
        %v2445 = vsel %vm309, %v2312, 0.0
        %v2446 = vadd.f32 %v2444, %v2445
        %v2447 = vsel %vm309, %v2317, 0.0
        %v2448 = vadd.f32 %v2446, %v2447
        %v2449 = vsel %vm309, %v2322, 0.0
        %v2450 = vadd.f32 %v2448, %v2449
        %v2451 = vsel %vm309, %v2327, 0.0
        %v2452 = vadd.f32 %v2450, %v2451
        %v2453 = vsel %vm309, %v2332, 0.0
        %v2454 = vadd.f32 %v2452, %v2453
        %v2455 = vsel %vm309, %v2337, 0.0
        %v2456 = vadd.f32 %v2454, %v2455
        %v2457 = vsel %vm309, %v2342, 0.0
        %v2458 = vadd.f32 %v2456, %v2457
        %v2459 = vsel %vm309, %v2347, 0.0
        %v2460 = vadd.f32 %v2458, %v2459
        %v2461 = vsel %vm309, %v2352, 0.0
        %v2462 = vadd.f32 %v2460, %v2461
        %v2463 = vsel %vm309, %v2357, 0.0
        %v2464 = vadd.f32 %v2462, %v2463
        %v2465 = vsel %vm309, %v2362, 0.0
        %v2466 = vadd.f32 %v2464, %v2465
        %v2467 = vsel %vm309, %v2367, 0.0
        %v2468 = vadd.f32 %v2466, %v2467
        %v2469 = vsel %vm309, %v2372, 0.0
        %v2470 = vadd.f32 %v2468, %v2469
        %v2471 = vrot.slane %v2470, 4
        %v2472 = vadd.f32 %v2470, %v2471
        %v2473 = vrot.slane %v2472, 2
        %v2474 = vadd.f32 %v2472, %v2473
        %v2475 = vrot.slane %v2474, 1
        %v2476 = vadd.f32 %v2474, %v2475
        %v2477 = vadd.f32 %v2407, %v2476
        %vm2478 = vcmask 253952
        %2479 = vst.msk [vmem:[#allocation4] sm:$0x1] %vm2478, %v2477
        %v2480 = vld [vmem:[#allocation4 + $0x1] sm:$0x1]
        %v2481 = vmul.f32 %v2217, %v2217
        %v2482 = vmul.f32 %v2222, %v2222
        %v2483 = vmul.f32 %v2227, %v2227
        %v2484 = vmul.f32 %v2232, %v2232
        %v2485 = vmul.f32 %v2237, %v2237
        %v2486 = vmul.f32 %v2242, %v2242
        %v2487 = vmul.f32 %v2247, %v2247
        %v2488 = vmul.f32 %v2252, %v2252
        %v2489 = vmul.f32 %v2257, %v2257
        %v2490 = vmul.f32 %v2262, %v2262
        %v2491 = vmul.f32 %v2267, %v2267
        %v2492 = vmul.f32 %v2272, %v2272
        %v2493 = vmul.f32 %v2277, %v2277
        %v2494 = vmul.f32 %v2282, %v2282
        %v2495 = vmul.f32 %v2287, %v2287
        %v2496 = vmul.f32 %v2292, %v2292
        %v2497 = vmul.f32 %v2297, %v2297
        %v2498 = vmul.f32 %v2302, %v2302
        %v2499 = vmul.f32 %v2307, %v2307
        %v2500 = vmul.f32 %v2312, %v2312
        %v2501 = vmul.f32 %v2317, %v2317
        %v2502 = vmul.f32 %v2322, %v2322
        %v2503 = vmul.f32 %v2327, %v2327
        %v2504 = vmul.f32 %v2332, %v2332
        %v2505 = vmul.f32 %v2337, %v2337
        %v2506 = vmul.f32 %v2342, %v2342
        %v2507 = vmul.f32 %v2347, %v2347
        %v2508 = vmul.f32 %v2352, %v2352
        %v2509 = vmul.f32 %v2357, %v2357
        %v2510 = vmul.f32 %v2362, %v2362
        %v2511 = vmul.f32 %v2367, %v2367
        %v2512 = vmul.f32 %v2372, %v2372
        %v2513 = vsel %vm309, %v2481, 0.0
        %v2514 = vsel %vm309, %v2482, 0.0
        %v2515 = vadd.f32 %v2513, %v2514
        %v2516 = vsel %vm309, %v2483, 0.0
        %v2517 = vadd.f32 %v2515, %v2516
        %v2518 = vsel %vm309, %v2484, 0.0
        %v2519 = vadd.f32 %v2517, %v2518
        %v2520 = vsel %vm309, %v2485, 0.0
        %v2521 = vadd.f32 %v2519, %v2520
        %v2522 = vsel %vm309, %v2486, 0.0
        %v2523 = vadd.f32 %v2521, %v2522
        %v2524 = vsel %vm309, %v2487, 0.0
        %v2525 = vadd.f32 %v2523, %v2524
        %v2526 = vsel %vm309, %v2488, 0.0
        %v2527 = vadd.f32 %v2525, %v2526
        %v2528 = vsel %vm309, %v2489, 0.0
        %v2529 = vadd.f32 %v2527, %v2528
        %v2530 = vsel %vm309, %v2490, 0.0
        %v2531 = vadd.f32 %v2529, %v2530
        %v2532 = vsel %vm309, %v2491, 0.0
        %v2533 = vadd.f32 %v2531, %v2532
        %v2534 = vsel %vm309, %v2492, 0.0
        %v2535 = vadd.f32 %v2533, %v2534
        %v2536 = vsel %vm309, %v2493, 0.0
        %v2537 = vadd.f32 %v2535, %v2536
        %v2538 = vsel %vm309, %v2494, 0.0
        %v2539 = vadd.f32 %v2537, %v2538
        %v2540 = vsel %vm309, %v2495, 0.0
        %v2541 = vadd.f32 %v2539, %v2540
        %v2542 = vsel %vm309, %v2496, 0.0
        %v2543 = vadd.f32 %v2541, %v2542
        %v2544 = vsel %vm309, %v2497, 0.0
        %v2545 = vadd.f32 %v2543, %v2544
        %v2546 = vsel %vm309, %v2498, 0.0
        %v2547 = vadd.f32 %v2545, %v2546
        %v2548 = vsel %vm309, %v2499, 0.0
        %v2549 = vadd.f32 %v2547, %v2548
        %v2550 = vsel %vm309, %v2500, 0.0
        %v2551 = vadd.f32 %v2549, %v2550
        %v2552 = vsel %vm309, %v2501, 0.0
        %v2553 = vadd.f32 %v2551, %v2552
        %v2554 = vsel %vm309, %v2502, 0.0
        %v2555 = vadd.f32 %v2553, %v2554
        %v2556 = vsel %vm309, %v2503, 0.0
        %v2557 = vadd.f32 %v2555, %v2556
        %v2558 = vsel %vm309, %v2504, 0.0
        %v2559 = vadd.f32 %v2557, %v2558
        %v2560 = vsel %vm309, %v2505, 0.0
        %v2561 = vadd.f32 %v2559, %v2560
        %v2562 = vsel %vm309, %v2506, 0.0
        %v2563 = vadd.f32 %v2561, %v2562
        %v2564 = vsel %vm309, %v2507, 0.0
        %v2565 = vadd.f32 %v2563, %v2564
        %v2566 = vsel %vm309, %v2508, 0.0
        %v2567 = vadd.f32 %v2565, %v2566
        %v2568 = vsel %vm309, %v2509, 0.0
        %v2569 = vadd.f32 %v2567, %v2568
        %v2570 = vsel %vm309, %v2510, 0.0
        %v2571 = vadd.f32 %v2569, %v2570
        %v2572 = vsel %vm309, %v2511, 0.0
        %v2573 = vadd.f32 %v2571, %v2572
        %v2574 = vsel %vm309, %v2512, 0.0
        %v2575 = vadd.f32 %v2573, %v2574
        %v2576 = vrot.slane %v2575, 4
        %v2577 = vadd.f32 %v2575, %v2576
        %v2578 = vrot.slane %v2577, 2
        %v2579 = vadd.f32 %v2577, %v2578
        %v2580 = vrot.slane %v2579, 1
        %v2581 = vadd.f32 %v2579, %v2580
        %v2582 = vadd.f32 %v2480, %v2581
        %2583 = vst.msk [vmem:[#allocation4 + $0x1] sm:$0x1] %vm2478, %v2582
        %p2584 = scmp.eq.s32.totalorder %s23, 1
        // Predicated region
        $region41: #{tpu_custom_call.1} parent=31 // pred_check
          %p2585 = pneg %p2584
        $region42: #{tpu_custom_call.1} parent=31 // pred_check_branch
          %2587 = sbr.rel (%p2585) target = $region44
        $region43: #{tpu_custom_call.1} parent=31 // pred_region
          %v2588 = vld [vmem:[#allocation4] sm:$0x1]
          %v2589 = vmul.f32 %v2588, 0.001953125
          %v2590 = vld [vmem:[#allocation4 + $0x1] sm:$0x1]
          %v2591 = vmul.f32 %v2590, 0.001953125
          %v2592 = vmul.f32 %v2589, %v2589
          %v2593 = vsub.f32 %v2591, %v2592
          %2594 = vst.msk [vmem:[#allocation9] sm:$0x1] %vm2478, %v2589
          %v2595 = vadd.f32 %v2593, 1e-05
          %v2596 = vrsqrt.pop %v2595
          %2597 = vst.msk [vmem:[#allocation9 + $0x1] sm:$0x1] %vm2478, %v2596
        $region44: #{tpu_custom_call.1} parent=31 // pred_fallthru
          _
        %s2598 = sand.u32 %s99, 1
        %s2599 = scalar_lea.sflag [#allocation7], %s2598
        %s2600 = sand.u32 %s99, 1
        %s2601 = smul.addr %s2600, 256
        %s2602 = scalar_lea.vmem [#allocation8], %s2601
        // Predicated region
        $region45: #{tpu_custom_call.1} parent=31 // pred_check
          %p2603 = pneg %p109
        $region46: #{tpu_custom_call.1} parent=31 // pred_check_branch
          %2605 = sbr.rel (%p2603) target = $region48
        $region47: #{tpu_custom_call.1} parent=31 // pred_region
          %s2607 = ssub.s32 4096, 4096
          %2608 = vsyncadd %s2599, %s2607
          %s2609 = smul.addr %s23, 32
          %s2610 = smul.addr %s2609, 128
          %s2611 = scalar_lea.hbm %s3, %s2610
          %s2612 = sshll.u32 %s2602, 4
          %s2613 = int_to_ptr.vmem [resolvable:$true] %s2612
          %2618 = dma.vmem_to_hbm [thread:$0]  %s2613, 4096, %s2611, %s2599, 128, 128, 8
        $region48: #{tpu_custom_call.1} parent=31 // pred_fallthru
          _
        // Predicated region
        $region49: #{tpu_custom_call.1} parent=31 // pred_check
          %p2619 = pneg %p130
        $region50: #{tpu_custom_call.1} parent=31 // pred_check_branch
          %2621 = sbr.rel (%p2619) target = $region52
        $region51: #{tpu_custom_call.1} parent=31 // pred_region
          %s2623 = ssub.s32 32, 32
          %2624 = vsyncadd [#allocation10], %s2623
          %s2626 = sshll.u32 [#allocation9], 4
          %s2627 = int_to_ptr.vmem [resolvable:$true] %s2626
          %2629 = dma.vmem_to_hbm [thread:$0]  %s2627, 32, %s4, [#allocation10]
        $region52: #{tpu_custom_call.1} parent=31 // pred_fallthru
          _
        // Predicated region
        $region53: #{tpu_custom_call.1} parent=31 // pred_check
          %p2630 = pneg %p130
        $region54: #{tpu_custom_call.1} parent=31 // pred_check_branch
          %2632 = sbr.rel (%p2630) target = $region56
        $region55: #{tpu_custom_call.1} parent=31 // pred_region
          %2633 = dma.done [#allocation10], 32
        $region56: #{tpu_custom_call.1} parent=31 // pred_fallthru
          _
      $region32: #{tpu_custom_call.1} parent=5 // pred_fallthru
        _
      %p2634 = scmp.le.s32.totalorder 2, %s18
      // Predicated region
      $region57: #{tpu_custom_call.1} parent=5 // pred_check
        %p2635 = pneg %p2634
      $region58: #{tpu_custom_call.1} parent=5 // pred_check_branch
        %2637 = sbr.rel (%p2635) target = $region60
      $region59: #{tpu_custom_call.1} parent=5 // pred_region
        %s2638 = ssub.s32 %s18, 2
        // Predicated region
        $region61: #{tpu_custom_call.1} parent=59 // pred_check
          %p2639 = pneg %p115
        $region62: #{tpu_custom_call.1} parent=59 // pred_check_branch
          %2641 = sbr.rel (%p2639) target = $region64
        $region63: #{tpu_custom_call.1} parent=59 // pred_region
          %s2642 = sand.u32 %s100, 1
          %s2643 = scalar_lea.sflag [#allocation7], %s2642
          %s2644 = sand.u32 %s100, 1
          %s2645 = smul.addr %s2644, 256
          %s2646 = scalar_lea.vmem [#allocation8], %s2645
          %2647 = dma.done %s2643, 4096
        $region64: #{tpu_custom_call.1} parent=59 // pred_fallthru
          _
      $region60: #{tpu_custom_call.1} parent=5 // pred_fallthru
        _
    $region6: #{tpu_custom_call.1} parent=1 // loop_footer
      %s22 = sadd.s32 1, %s18
    $region7: #{tpu_custom_call.1} parent=1 // loop_footer_branch
      %17 = sbr.rel target = $region3
    $region8: #{tpu_custom_call.1} parent=1 // loop_exit
      _
    %2648 = vsyncpa [#allocation6], 1
    %s2649 = scalar_lea.sflag [#allocation6], 1
    %2650 = vsyncpa %s2649, 1
    %2651 = vsyncpa [#allocation7], 1
    %s2652 = scalar_lea.sflag [#allocation7], 1
    %2653 = vsyncpa %s2652, 1
    %2654 = vsyncpa [#allocation10], 1

</llo_original>
